<compile_context>
chip_gen: v5e
topology: v5e:2x2
jax: 0.10.0
libtpu: 0.0.40
codegen_flags: <defaults>
</compile_context>

<pallas_src>
import numpy as np
import jax
import jax.numpy as jnp
from jax import lax
from jax.experimental import pallas as pl
from jax.experimental.pallas import tpu as pltpu

N_EMBD = 32
N_HEAD = 4
HEAD_SIZE = N_EMBD // N_HEAD
BLOCK_SIZE = 8          # sequence length T (== block_size of the causal mask)
BATCH = 2
EPS = 1e-5              # nn.LayerNorm default eps
NEG_BIG = -1e30         # finite "minus infinity" for the additive mask


def _layernorm(x, g, b):
    mu = jnp.mean(x, axis=-1, keepdims=True)
    var = jnp.mean((x - mu) ** 2, axis=-1, keepdims=True)   # biased, like PyTorch
    return (x - mu) * lax.rsqrt(var + EPS) * g + b


def block_kernel(x_ref, mask_ref,
                 ln1_g, ln1_b,
                 wqkv, wproj, bproj,
                 ln2_g, ln2_b,
                 w1, b1, w2, b2,
                 out_ref):
    x = x_ref[...].astype(jnp.float32)            # (BT, C)
    BT, C = x.shape

    # ---- ln1 + causal multi-head self-attention -------------------------
    h1 = _layernorm(x, ln1_g[...], ln1_b[...])

    # Fused QKV projection (q columns pre-scaled by C**-0.5 at prep time).
    qkv = jnp.dot(h1, wqkv[...], preferred_element_type=jnp.float32)   # (BT, 3C)
    # Head-major layout, one relayout per operand: (BT, H, D) -> (H, BT, D).
    q = jnp.swapaxes(qkv[:, 0 * C:1 * C].reshape(BT, N_HEAD, HEAD_SIZE), 0, 1)
    k = jnp.swapaxes(qkv[:, 1 * C:2 * C].reshape(BT, N_HEAD, HEAD_SIZE), 0, 1)
    v = jnp.swapaxes(qkv[:, 2 * C:3 * C].reshape(BT, N_HEAD, HEAD_SIZE), 0, 1)

    # Leading-batch contraction over the head axis: (H, BT, BT).
    att = jnp.einsum('hqd,hkd->hqk', q, k, preferred_element_type=jnp.float32)
    # Block-diagonal causal additive mask (0 / -1e30), shared by all heads.
    att = att + mask_ref[...][None, :, :]
    # No max-subtraction: scores are LayerNorm-bounded (|score| << 88) and every
    # row keeps its diagonal unmasked, so exp can't overflow and denom > 0.
    e = jnp.exp(att)
    p = e / jnp.sum(e, axis=-1, keepdims=True)    # attn dropout: identity (eval)

    ctx = jnp.einsum('hqk,hkd->hqd', p, v, preferred_element_type=jnp.float32)
    sa = jnp.swapaxes(ctx, 0, 1).reshape(BT, C)   # == torch.cat over heads
    sa = jnp.dot(sa, wproj[...], preferred_element_type=jnp.float32) + bproj[...]
    x = x + sa                                    # residual 1 (proj dropout = id)

    # ---- ln2 + feed-forward ---------------------------------------------
    h2 = _layernorm(x, ln2_g[...], ln2_b[...])
    ff = jnp.dot(h2, w1[...], preferred_element_type=jnp.float32) + b1[...]
    ff = jnp.maximum(ff, 0.0)
    ff = jnp.dot(ff, w2[...], preferred_element_type=jnp.float32) + b2[...]
    x = x + ff                                    # residual 2 (ffwd dropout = id)

    out_ref[...] = x.astype(out_ref.dtype)


def prepare_block_params(params, batch, seq_len):
    """One-time (init-time) weight/mask prep: everything the forward path
    should NOT pay for per call."""
    (ln1_g, ln1_b, wq, wk, wv, wproj, bproj, ln2_g, ln2_b, w1, b1, w2, b2) = params
    C = wq.shape[1]
    scale = C ** (-0.5)      # reference scales scores by n_embd**-0.5, not head_size
    # Pre-transpose to (in, out), fuse q/k/v, fold the score scale into q.
    wqkv_t = jnp.concatenate([wq.T * scale, wk.T, wv.T], axis=1)   # (C, 3C)
    wproj_t = jnp.asarray(wproj.T)                                 # (C, C)
    w1_t = jnp.asarray(w1.T)                                       # (C, 4C)
    w2_t = jnp.asarray(w2.T)                                       # (4C, C)

    # Block-diagonal causal additive mask over flattened (B*T) rows.
    bt = batch * seq_len
    r = np.arange(bt)
    same_batch = (r[:, None] // seq_len) == (r[None, :] // seq_len)
    causal = (r[None, :] % seq_len) <= (r[:, None] % seq_len)
    mask_bias = jnp.asarray(
        np.where(same_batch & causal, 0.0, NEG_BIG).astype(np.float32))

    return (mask_bias, ln1_g, ln1_b, wqkv_t, wproj_t, bproj,
            ln2_g, ln2_b, w1_t, b1, w2_t, b2)


def block_forward(x, prepped):
    B, T, C = x.shape
    BT = B * T
    inputs = (x.reshape(BT, C),) + tuple(prepped)
    vmem = pl.BlockSpec(memory_space=pltpu.MemorySpace.VMEM)
    out2d = pl.pallas_call(
        block_kernel,
        out_shape=jax.ShapeDtypeStruct((BT, C), x.dtype),
        in_specs=[vmem] * len(inputs),   # whole arrays in VMEM, no grid/pipeline
        out_specs=vmem,
    )(*inputs)
    return out2d.reshape(B, T, C)


def init_params(key):
    C, H = N_EMBD, 4 * N_EMBD
    ks = jax.random.split(key, 10)

    def linear_w(k, out_f, in_f):
        bound = 1.0 / np.sqrt(in_f)
        return jax.random.uniform(k, (out_f, in_f), jnp.float32, -bound, bound)

    def linear_b(k, out_f, in_f):
        bound = 1.0 / np.sqrt(in_f)
        return jax.random.uniform(k, (1, out_f), jnp.float32, -bound, bound)

    ln1_g = jnp.ones((1, C), jnp.float32)
    ln1_b = jnp.zeros((1, C), jnp.float32)
    ln2_g = jnp.ones((1, C), jnp.float32)
    ln2_b = jnp.zeros((1, C), jnp.float32)
    wq = linear_w(ks[0], C, C)          # concat of per-head (head_size, C) weights
    wk = linear_w(ks[1], C, C)
    wv = linear_w(ks[2], C, C)
    wproj = linear_w(ks[3], C, C)
    bproj = linear_b(ks[4], C, C)
    w1 = linear_w(ks[5], H, C)
    b1 = linear_b(ks[6], H, C)
    w2 = linear_w(ks[7], C, H)
    b2 = linear_b(ks[8], C, H)
    return (ln1_g, ln1_b, wq, wk, wv, wproj, bproj, ln2_g, ln2_b, w1, b1, w2, b2)


def reference_block(x, params):
    (ln1_g, ln1_b, wq, wk, wv, wproj, bproj, ln2_g, ln2_b, w1, b1, w2, b2) = params
    B, T, C = x.shape

    def ln(z, g, b):
        mu = z.mean(-1, keepdims=True)
        var = ((z - mu) ** 2).mean(-1, keepdims=True)
        return (z - mu) / jnp.sqrt(var + EPS) * g + b

    h1 = ln(x, ln1_g, ln1_b)
    q = (h1 @ wq.T).reshape(B, T, N_HEAD, HEAD_SIZE).transpose(0, 2, 1, 3)
    k = (h1 @ wk.T).reshape(B, T, N_HEAD, HEAD_SIZE).transpose(0, 2, 1, 3)
    v = (h1 @ wv.T).reshape(B, T, N_HEAD, HEAD_SIZE).transpose(0, 2, 1, 3)
    att = jnp.einsum("bhqd,bhkd->bhqk", q, k) * (C ** -0.5)
    mask = jnp.tril(jnp.ones((T, T), bool))
    att = jnp.where(mask, att, -jnp.inf)
    att = jax.nn.softmax(att, axis=-1)
    out = jnp.einsum("bhqk,bhkd->bhqd", att, v)
    out = out.transpose(0, 2, 1, 3).reshape(B, T, C)
    x = x + out @ wproj.T + bproj
    h2 = ln(x, ln2_g, ln2_b)
    ff = jnp.maximum(h2 @ w1.T + b1, 0.0) @ w2.T + b2
    return x + ff


if __name__ == "__main__":
    key = jax.random.PRNGKey(0)
    k_x, k_p = jax.random.split(key)
    x = jax.random.normal(k_x, (BATCH, BLOCK_SIZE, N_EMBD), jnp.float32)
    params = init_params(k_p)

    # One-time prep (fused/transposed weights + mask), outside the hot path.
    prepped = prepare_block_params(params, BATCH, BLOCK_SIZE)

    fwd = jax.jit(block_forward)
    y = jax.block_until_ready(fwd(x, prepped))

    y_ref = reference_block(x, params)
    # Exact softmax division now -> tight tolerance (f32 reordering only).
    np.testing.assert_allclose(np.asarray(y), np.asarray(y_ref),
                               rtol=1e-5, atol=1e-5)
    print("KERNEL_OK")
</pallas_src>

<mosaic_0001>
module attributes {stable_mosaic.version = 11 : i64} {
  func.func @block_kernel(%arg0: memref<16x32xf32, #tpu.memory_space<vmem>>, %arg1: memref<16x16xf32, #tpu.memory_space<vmem>>, %arg2: memref<1x32xf32, #tpu.memory_space<vmem>>, %arg3: memref<1x32xf32, #tpu.memory_space<vmem>>, %arg4: memref<32x96xf32, #tpu.memory_space<vmem>>, %arg5: memref<32x32xf32, #tpu.memory_space<vmem>>, %arg6: memref<1x32xf32, #tpu.memory_space<vmem>>, %arg7: memref<1x32xf32, #tpu.memory_space<vmem>>, %arg8: memref<1x32xf32, #tpu.memory_space<vmem>>, %arg9: memref<32x128xf32, #tpu.memory_space<vmem>>, %arg10: memref<1x128xf32, #tpu.memory_space<vmem>>, %arg11: memref<128x32xf32, #tpu.memory_space<vmem>>, %arg12: memref<1x32xf32, #tpu.memory_space<vmem>>, %arg13: memref<16x32xf32, #tpu.memory_space<vmem>>) attributes {dimension_semantics = [], scalar_prefetch = 0 : i64, scratch_operands = 0 : i64, tpu.core_type = #tpu.core_type<tc>} {
    %c0 = arith.constant 0 : index
    %c0_0 = arith.constant 0 : index
    %0 = vector.load %arg0[%c0, %c0_0] : memref<16x32xf32, #tpu.memory_space<vmem>>, vector<16x32xf32>
    %c0_1 = arith.constant 0 : index
    %c0_2 = arith.constant 0 : index
    %1 = vector.load %arg2[%c0_1, %c0_2] : memref<1x32xf32, #tpu.memory_space<vmem>>, vector<1x32xf32>
    %c0_3 = arith.constant 0 : index
    %c0_4 = arith.constant 0 : index
    %2 = vector.load %arg3[%c0_3, %c0_4] : memref<1x32xf32, #tpu.memory_space<vmem>>, vector<1x32xf32>
    %cst = arith.constant dense<0.000000e+00> : vector<16xf32>
    %3 = vector.multi_reduction <add>, %0, %cst [1] : vector<16x32xf32> to vector<16xf32>
    %4 = vector.shape_cast %3 : vector<16xf32> to vector<16x1xf32>
    %cst_5 = arith.constant 3.200000e+01 : f32
    %5 = vector.broadcast %cst_5 : f32 to vector<16x1xf32>
    %6 = arith.divf %4, %5 : vector<16x1xf32>
    %7 = vector.broadcast %6 : vector<16x1xf32> to vector<16x32xf32>
    %8 = arith.subf %0, %7 : vector<16x32xf32>
    %9 = arith.mulf %8, %8 : vector<16x32xf32>
    %cst_6 = arith.constant dense<0.000000e+00> : vector<16xf32>
    %10 = vector.multi_reduction <add>, %9, %cst_6 [1] : vector<16x32xf32> to vector<16xf32>
    %11 = vector.shape_cast %10 : vector<16xf32> to vector<16x1xf32>
    %cst_7 = arith.constant 3.200000e+01 : f32
    %12 = vector.broadcast %cst_7 : f32 to vector<16x1xf32>
    %13 = arith.divf %11, %12 : vector<16x1xf32>
    %14 = vector.broadcast %6 : vector<16x1xf32> to vector<16x32xf32>
    %15 = arith.subf %0, %14 : vector<16x32xf32>
    %cst_8 = arith.constant 9.99999974E-6 : f32
    %16 = vector.broadcast %cst_8 : f32 to vector<16x1xf32>
    %17 = arith.addf %13, %16 : vector<16x1xf32>
    %18 = math.rsqrt %17 : vector<16x1xf32>
    %19 = vector.broadcast %18 : vector<16x1xf32> to vector<16x32xf32>
    %20 = arith.mulf %15, %19 : vector<16x32xf32>
    %21 = vector.broadcast %1 : vector<1x32xf32> to vector<16x32xf32>
    %22 = arith.mulf %20, %21 : vector<16x32xf32>
    %23 = vector.broadcast %2 : vector<1x32xf32> to vector<16x32xf32>
    %24 = arith.addf %22, %23 : vector<16x32xf32>
    %c0_9 = arith.constant 0 : index
    %c0_10 = arith.constant 0 : index
    %25 = vector.load %arg4[%c0_9, %c0_10] : memref<32x96xf32, #tpu.memory_space<vmem>>, vector<32x96xf32>
    %cst_11 = arith.constant dense<0.000000e+00> : vector<16x96xf32>
    %26 = tpu.matmul %24, %25, %cst_11 {dimension_numbers = #tpu.dot_dimension_numbers<[1], [0], [0], [1], [0, 0, 1, 1], [], []>} : vector<16x32xf32>, vector<32x96xf32>, vector<16x96xf32> -> vector<16x96xf32>
    %27 = vector.extract_strided_slice %26 {offsets = [0, 0], sizes = [16, 32], strides = [1, 1]} : vector<16x96xf32> to vector<16x32xf32>
    %28 = vector.shape_cast %27 : vector<16x32xf32> to vector<16x4x8xf32>
    %29 = tpu.transpose %28, [1, 0, 2] : vector<16x4x8xf32> -> vector<4x16x8xf32>
    %30 = vector.extract_strided_slice %26 {offsets = [0, 32], sizes = [16, 32], strides = [1, 1]} : vector<16x96xf32> to vector<16x32xf32>
    %31 = vector.shape_cast %30 : vector<16x32xf32> to vector<16x4x8xf32>
    %32 = tpu.transpose %31, [1, 0, 2] : vector<16x4x8xf32> -> vector<4x16x8xf32>
    %33 = vector.extract_strided_slice %26 {offsets = [0, 64], sizes = [16, 32], strides = [1, 1]} : vector<16x96xf32> to vector<16x32xf32>
    %34 = vector.shape_cast %33 : vector<16x32xf32> to vector<16x4x8xf32>
    %35 = tpu.transpose %34, [1, 0, 2] : vector<16x4x8xf32> -> vector<4x16x8xf32>
    "tpu.trace_start"() <{level = 10 : i32, message = "hqd,hkd->hqk"}> : () -> ()
    %cst_12 = arith.constant dense<0.000000e+00> : vector<4x16x16xf32>
    %36 = tpu.matmul %29, %32, %cst_12 {dimension_numbers = #tpu.dot_dimension_numbers<[2], [2], [1], [1], [0, 0, 0, 1, 1, 1], [0], [0]>} : vector<4x16x8xf32>, vector<4x16x8xf32>, vector<4x16x16xf32> -> vector<4x16x16xf32>
    "tpu.trace_stop"() : () -> ()
    %c0_13 = arith.constant 0 : index
    %c0_14 = arith.constant 0 : index
    %37 = vector.load %arg1[%c0_13, %c0_14] : memref<16x16xf32, #tpu.memory_space<vmem>>, vector<16x16xf32>
    %38 = vector.shape_cast %37 : vector<16x16xf32> to vector<1x16x16xf32>
    %39 = vector.broadcast %38 : vector<1x16x16xf32> to vector<4x16x16xf32>
    %40 = arith.addf %36, %39 : vector<4x16x16xf32>
    %41 = math.exp %40 : vector<4x16x16xf32>
    %cst_15 = arith.constant dense<0.000000e+00> : vector<4x16xf32>
    %42 = vector.multi_reduction <add>, %41, %cst_15 [2] : vector<4x16x16xf32> to vector<4x16xf32>
    %43 = vector.shape_cast %42 : vector<4x16xf32> to vector<4x16x1xf32>
    %44 = vector.broadcast %43 : vector<4x16x1xf32> to vector<4x16x16xf32>
    %45 = arith.divf %41, %44 : vector<4x16x16xf32>
    "tpu.trace_start"() <{level = 10 : i32, message = "hqk,hkd->hqd"}> : () -> ()
    %cst_16 = arith.constant dense<0.000000e+00> : vector<4x16x8xf32>
    %46 = tpu.matmul %45, %35, %cst_16 {dimension_numbers = #tpu.dot_dimension_numbers<[2], [1], [1], [2], [0, 0, 0, 1, 1, 2], [0], [0]>} : vector<4x16x16xf32>, vector<4x16x8xf32>, vector<4x16x8xf32> -> vector<4x16x8xf32>
    "tpu.trace_stop"() : () -> ()
    %47 = tpu.transpose %46, [1, 0, 2] : vector<4x16x8xf32> -> vector<16x4x8xf32>
    %48 = vector.shape_cast %47 : vector<16x4x8xf32> to vector<16x32xf32>
    %c0_17 = arith.constant 0 : index
    %c0_18 = arith.constant 0 : index
    %49 = vector.load %arg5[%c0_17, %c0_18] : memref<32x32xf32, #tpu.memory_space<vmem>>, vector<32x32xf32>
    %cst_19 = arith.constant dense<0.000000e+00> : vector<16x32xf32>
    %50 = tpu.matmul %48, %49, %cst_19 {dimension_numbers = #tpu.dot_dimension_numbers<[1], [0], [0], [1], [0, 0, 1, 1], [], []>} : vector<16x32xf32>, vector<32x32xf32>, vector<16x32xf32> -> vector<16x32xf32>
    %c0_20 = arith.constant 0 : index
    %c0_21 = arith.constant 0 : index
    %51 = vector.load %arg6[%c0_20, %c0_21] : memref<1x32xf32, #tpu.memory_space<vmem>>, vector<1x32xf32>
    %52 = vector.broadcast %51 : vector<1x32xf32> to vector<16x32xf32>
    %53 = arith.addf %50, %52 : vector<16x32xf32>
    %54 = arith.addf %0, %53 : vector<16x32xf32>
    %c0_22 = arith.constant 0 : index
    %c0_23 = arith.constant 0 : index
    %55 = vector.load %arg7[%c0_22, %c0_23] : memref<1x32xf32, #tpu.memory_space<vmem>>, vector<1x32xf32>
    %c0_24 = arith.constant 0 : index
    %c0_25 = arith.constant 0 : index
    %56 = vector.load %arg8[%c0_24, %c0_25] : memref<1x32xf32, #tpu.memory_space<vmem>>, vector<1x32xf32>
    %cst_26 = arith.constant dense<0.000000e+00> : vector<16xf32>
    %57 = vector.multi_reduction <add>, %54, %cst_26 [1] : vector<16x32xf32> to vector<16xf32>
    %58 = vector.shape_cast %57 : vector<16xf32> to vector<16x1xf32>
    %cst_27 = arith.constant 3.200000e+01 : f32
    %59 = vector.broadcast %cst_27 : f32 to vector<16x1xf32>
    %60 = arith.divf %58, %59 : vector<16x1xf32>
    %61 = vector.broadcast %60 : vector<16x1xf32> to vector<16x32xf32>
    %62 = arith.subf %54, %61 : vector<16x32xf32>
    %63 = arith.mulf %62, %62 : vector<16x32xf32>
    %cst_28 = arith.constant dense<0.000000e+00> : vector<16xf32>
    %64 = vector.multi_reduction <add>, %63, %cst_28 [1] : vector<16x32xf32> to vector<16xf32>
    %65 = vector.shape_cast %64 : vector<16xf32> to vector<16x1xf32>
    %cst_29 = arith.constant 3.200000e+01 : f32
    %66 = vector.broadcast %cst_29 : f32 to vector<16x1xf32>
    %67 = arith.divf %65, %66 : vector<16x1xf32>
    %68 = vector.broadcast %60 : vector<16x1xf32> to vector<16x32xf32>
    %69 = arith.subf %54, %68 : vector<16x32xf32>
    %cst_30 = arith.constant 9.99999974E-6 : f32
    %70 = vector.broadcast %cst_30 : f32 to vector<16x1xf32>
    %71 = arith.addf %67, %70 : vector<16x1xf32>
    %72 = math.rsqrt %71 : vector<16x1xf32>
    %73 = vector.broadcast %72 : vector<16x1xf32> to vector<16x32xf32>
    %74 = arith.mulf %69, %73 : vector<16x32xf32>
    %75 = vector.broadcast %55 : vector<1x32xf32> to vector<16x32xf32>
    %76 = arith.mulf %74, %75 : vector<16x32xf32>
    %77 = vector.broadcast %56 : vector<1x32xf32> to vector<16x32xf32>
    %78 = arith.addf %76, %77 : vector<16x32xf32>
    %c0_31 = arith.constant 0 : index
    %c0_32 = arith.constant 0 : index
    %79 = vector.load %arg9[%c0_31, %c0_32] : memref<32x128xf32, #tpu.memory_space<vmem>>, vector<32x128xf32>
    %cst_33 = arith.constant dense<0.000000e+00> : vector<16x128xf32>
    %80 = tpu.matmul %78, %79, %cst_33 {dimension_numbers = #tpu.dot_dimension_numbers<[1], [0], [0], [1], [0, 0, 1, 1], [], []>} : vector<16x32xf32>, vector<32x128xf32>, vector<16x128xf32> -> vector<16x128xf32>
    %c0_34 = arith.constant 0 : index
    %c0_35 = arith.constant 0 : index
    %81 = vector.load %arg10[%c0_34, %c0_35] : memref<1x128xf32, #tpu.memory_space<vmem>>, vector<1x128xf32>
    %82 = vector.broadcast %81 : vector<1x128xf32> to vector<16x128xf32>
    %83 = arith.addf %80, %82 : vector<16x128xf32>
    %cst_36 = arith.constant 0.000000e+00 : f32
    %84 = vector.broadcast %cst_36 : f32 to vector<16x128xf32>
    %85 = arith.maximumf %83, %84 : vector<16x128xf32>
    %c0_37 = arith.constant 0 : index
    %c0_38 = arith.constant 0 : index
    %86 = vector.load %arg11[%c0_37, %c0_38] : memref<128x32xf32, #tpu.memory_space<vmem>>, vector<128x32xf32>
    %cst_39 = arith.constant dense<0.000000e+00> : vector<16x32xf32>
    %87 = tpu.matmul %85, %86, %cst_39 {dimension_numbers = #tpu.dot_dimension_numbers<[1], [0], [0], [1], [0, 0, 1, 1], [], []>} : vector<16x128xf32>, vector<128x32xf32>, vector<16x32xf32> -> vector<16x32xf32>
    %c0_40 = arith.constant 0 : index
    %c0_41 = arith.constant 0 : index
    %88 = vector.load %arg12[%c0_40, %c0_41] : memref<1x32xf32, #tpu.memory_space<vmem>>, vector<1x32xf32>
    %89 = vector.broadcast %88 : vector<1x32xf32> to vector<16x32xf32>
    %90 = arith.addf %87, %89 : vector<16x32xf32>
    %91 = arith.addf %54, %90 : vector<16x32xf32>
    %c0_42 = arith.constant 0 : index
    %c0_43 = arith.constant 0 : index
    %92 = vector.load %arg13[%c0_42, %c0_43] : memref<16x32xf32, #tpu.memory_space<vmem>>, vector<16x32xf32>
    tpu.vector_store %arg13[%c0_42, %c0_43], %91 {strides = array<i32>} : memref<16x32xf32, #tpu.memory_space<vmem>>, vector<16x32xf32>,
    return
  }
}

</mosaic_0001>

<llo_original>
// kernel: block_forward.1
$region0: #{block_forward.1}
  #allocation0 [shape = 'u32[]', space=smem, size = 0x4, offset = 0x4, fixed_abs, tag = 'smem constant byte address 0x4 - core index']
  #allocation1 [shape = 'u32[72,128]{1,0:T(1,128)}', space=vmem, size = 0x9000, scoped, tag = 'internal scratch']
  %s0 = inlined_call_operand.vmem [shape: f32[16,32], index: 0, kind: input, shape index: {}]
  %s1 = inlined_call_operand.vmem [shape: f32[16,16], index: 1, kind: input, shape index: {}]
  %s2 = inlined_call_operand.vmem [shape: f32[1,32], index: 2, kind: input, shape index: {}]
  %s3 = inlined_call_operand.vmem [shape: f32[1,32], index: 3, kind: input, shape index: {}]
  %s4 = inlined_call_operand.vmem [shape: f32[32,96], index: 4, kind: input, shape index: {}]
  %s5 = inlined_call_operand.vmem [shape: f32[32,32], index: 5, kind: input, shape index: {}]
  %s6 = inlined_call_operand.vmem [shape: f32[1,32], index: 6, kind: input, shape index: {}]
  %s7 = inlined_call_operand.vmem [shape: f32[1,32], index: 7, kind: input, shape index: {}]
  %s8 = inlined_call_operand.vmem [shape: f32[1,32], index: 8, kind: input, shape index: {}]
  %s9 = inlined_call_operand.vmem [shape: f32[32,128], index: 9, kind: input, shape index: {}]
  %s10 = inlined_call_operand.vmem [shape: f32[1,128], index: 10, kind: input, shape index: {}]
  %s11 = inlined_call_operand.vmem [shape: f32[128,32], index: 11, kind: input, shape index: {}]
  %s12 = inlined_call_operand.vmem [shape: f32[1,32], index: 12, kind: input, shape index: {}]
  %s13 = inlined_call_operand.hbm [shape: f32[16,32], index: 13, kind: output, shape index: {}]
  %s14 = sld [smem:[#allocation0]]
  $region62: #{block_forward.1} parent=0
    _
  %s16 = ssub.s32 1, %s14
  %s17 = scalar_select 0, %s16, %s14
  $region1: #{block_forward.1} parent=0
    #allocation2 [shape = 'u8[8192]{0}', space=vmem, size = 0x2000, scoped, tag = 'output window, operand 0, single buffered']
    #allocation3 [shape = 's32[1]{0}', space=sflag, size = 0x4, scoped, tag = 'scoped memory for block_forward.1']
    %18 = vsyncpa [#allocation3], 0
    // Predicated region
    $region2: #{block_forward.1} parent=1 // pred_check
      _
    $region3: #{block_forward.1} parent=1 // pred_check_branch
      %20 = sbr.rel (0) target = $region5
    $region4: #{block_forward.1} parent=1 // pred_region
      _
    $region5: #{block_forward.1} parent=1 // pred_fallthru
      _
    // Predicated region
    $region6: #{block_forward.1} parent=1 // pred_check
      _
    $region7: #{block_forward.1} parent=1 // pred_check_branch
      %22 = sbr.rel (0) target = $region9
    $region8: #{block_forward.1} parent=1 // pred_region
      _
    $region9: #{block_forward.1} parent=1 // pred_fallthru
      _
    // Predicated region
    $region10: #{block_forward.1} parent=1 // pred_check
      _
    $region11: #{block_forward.1} parent=1 // pred_check_branch
      %24 = sbr.rel (0) target = $region13
    $region12: #{block_forward.1} parent=1 // pred_region
      _
    $region13: #{block_forward.1} parent=1 // pred_fallthru
      _
    // Predicated region
    $region14: #{block_forward.1} parent=1 // pred_check
      _
    $region15: #{block_forward.1} parent=1 // pred_check_branch
      %26 = sbr.rel (0) target = $region17
    $region16: #{block_forward.1} parent=1 // pred_region
      _
    $region17: #{block_forward.1} parent=1 // pred_fallthru
      _
    // Predicated region
    $region18: #{block_forward.1} parent=1 // pred_check
      _
    $region19: #{block_forward.1} parent=1 // pred_check_branch
      %28 = sbr.rel (0) target = $region21
    $region20: #{block_forward.1} parent=1 // pred_region
      _
    $region21: #{block_forward.1} parent=1 // pred_fallthru
      _
    // Predicated region
    $region22: #{block_forward.1} parent=1 // pred_check
      _
    $region23: #{block_forward.1} parent=1 // pred_check_branch
      %30 = sbr.rel (0) target = $region25
    $region24: #{block_forward.1} parent=1 // pred_region
      _
    $region25: #{block_forward.1} parent=1 // pred_fallthru
      _
    // Predicated region
    $region26: #{block_forward.1} parent=1 // pred_check
      _
    $region27: #{block_forward.1} parent=1 // pred_check_branch
      %32 = sbr.rel (0) target = $region29
    $region28: #{block_forward.1} parent=1 // pred_region
      _
    $region29: #{block_forward.1} parent=1 // pred_fallthru
      _
    // Predicated region
    $region30: #{block_forward.1} parent=1 // pred_check
      _
    $region31: #{block_forward.1} parent=1 // pred_check_branch
      %34 = sbr.rel (0) target = $region33
    $region32: #{block_forward.1} parent=1 // pred_region
      _
    $region33: #{block_forward.1} parent=1 // pred_fallthru
      _
    // Predicated region
    $region34: #{block_forward.1} parent=1 // pred_check
      _
    $region35: #{block_forward.1} parent=1 // pred_check_branch
      %36 = sbr.rel (0) target = $region37
    $region36: #{block_forward.1} parent=1 // pred_region
      _
    $region37: #{block_forward.1} parent=1 // pred_fallthru
      _
    // Predicated region
    $region38: #{block_forward.1} parent=1 // pred_check
      _
    $region39: #{block_forward.1} parent=1 // pred_check_branch
      %38 = sbr.rel (0) target = $region41
    $region40: #{block_forward.1} parent=1 // pred_region
      _
    $region41: #{block_forward.1} parent=1 // pred_fallthru
      _
    // Predicated region
    $region42: #{block_forward.1} parent=1 // pred_check
      _
    $region43: #{block_forward.1} parent=1 // pred_check_branch
      %40 = sbr.rel (0) target = $region45
    $region44: #{block_forward.1} parent=1 // pred_region
      _
    $region45: #{block_forward.1} parent=1 // pred_fallthru
      _
    // Predicated region
    $region46: #{block_forward.1} parent=1 // pred_check
      _
    $region47: #{block_forward.1} parent=1 // pred_check_branch
      %42 = sbr.rel (0) target = $region49
    $region48: #{block_forward.1} parent=1 // pred_region
      _
    $region49: #{block_forward.1} parent=1 // pred_fallthru
      _
    // Predicated region
    $region50: #{block_forward.1} parent=1 // pred_check
      _
    $region51: #{block_forward.1} parent=1 // pred_check_branch
      %44 = sbr.rel (0) target = $region53
    $region52: #{block_forward.1} parent=1 // pred_region
      _
    $region53: #{block_forward.1} parent=1 // pred_fallthru
      _
    %v45 = vld [vmem:[%s0] sm:$0xff]
    %v46 = vld [vmem:[%s0 + $0x8] sm:$0xff]
    %v47 = vld [vmem:[%s2] sm:$0x1]
    %v48 = vld [vmem:[%s3] sm:$0x1]
    %vm49 = vcmask 261120
    %v50 = vsel %vm49, %v45, 0.0
    %51 = vadd.xlane.f32.xlu0 %v50
    %v52 = vpop.xlane.xlu0 %51
    %v53 = vsel %vm49, %v46, 0.0
    %54 = vadd.xlane.f32.xlu0 %v53
    %v55 = vpop.xlane.xlu0 %54
    %v56 = vrcp.pop 32.0
    %v57 = vmul.f32 32.0, %v56
    %v58 = vsub.f32 1.0, %v57
    %v59 = vmul.f32 %v56, %v58
    %v60 = vadd.f32 %v56, %v59
    %vm61 = vweird.f32 %v56
    %v62 = vsel %vm61, %v56, %v60
    %v63 = vmul.f32 %v52, %v62
    %v64 = vmul.f32 %v55, %v62
    %v65 = vsub.f32 %v45, %v63
    %v66 = vsub.f32 %v46, %v64
    %v67 = vmul.f32 %v65, %v65
    %v68 = vmul.f32 %v66, %v66
    %v69 = vsel %vm49, %v67, 0.0
    %70 = vadd.xlane.f32.xlu0 %v69
    %v71 = vpop.xlane.xlu0 %70
    %v72 = vsel %vm49, %v68, 0.0
    %73 = vadd.xlane.f32.xlu0 %v72
    %v74 = vpop.xlane.xlu0 %73
    %v75 = vmul.f32 %v71, %v62
    %v76 = vmul.f32 %v74, %v62
    %v77 = vadd.f32 %v75, 1e-05
    %v78 = vadd.f32 %v76, 1e-05
    %v79 = vrsqrt.pop %v77
    %v80 = vmul.f32 %v79, %v77
    %v81 = vmul.f32 %v80, %v79
    %v82 = vmul.f32 0.5, %v81
    %v83 = vsub.f32 1.5, %v82
    %v84 = vmul.f32 %v79, %v83
    %vm85 = vweird.f32 %v77
    %vm86 = vweird.f32 %v79
    %vm87 = vmor %vm85, %vm86
    %v88 = vsel %vm87, %v79, %v84
    %v89 = vrsqrt.pop %v78
    %v90 = vmul.f32 %v89, %v78
    %v91 = vmul.f32 %v90, %v89
    %v92 = vmul.f32 0.5, %v91
    %v93 = vsub.f32 1.5, %v92
    %v94 = vmul.f32 %v89, %v93
    %vm95 = vweird.f32 %v78
    %vm96 = vweird.f32 %v89
    %vm97 = vmor %vm95, %vm96
    %v98 = vsel %vm97, %v89, %v94
    %v99 = vmul.f32 %v65, %v88
    %v100 = vmul.f32 %v66, %v98
    %v102 = vperm.slane %v47, 0
    %v104 = vmul.f32 %v99, %v102
    %v105 = vmul.f32 %v100, %v102
    %v107 = vperm.slane %v48, 0
    %v109 = vadd.f32 %v104, %v107
    %v110 = vadd.f32 %v105, %v107
    %v111 = vld [vmem:[%s4] sm:$0xff]
    %v112 = vld [vmem:[%s4 + $0x8] sm:$0xff]
    %v113 = vld [vmem:[%s4 + $0x10] sm:$0xff]
    %v114 = vld [vmem:[%s4 + $0x18] sm:$0xff]
    %v116 = vsel %vm49, %v109, 0
    %v119 = vsel %vm49, %v110, 0
    %121 = vmatpush.msra.mxu0 0.0
    %122 = vmatpush.msra.mxu0 0.0
    %123 = vmatpush.msra.mxu0 0.0
    %124 = vmatpush.msra.mxu0 0.0
    %125 = vmatpush.msra.mxu0 0.0
    %126 = vmatpush.msra.mxu0 0.0
    %127 = vmatpush.msra.mxu0 0.0
    %128 = vmatpush.msra.mxu0 0.0
    %129 = vmatpush.msra.mxu0 0.0
    %130 = vmatpush.msra.mxu0 0.0
    %131 = vmatpush.msra.mxu0 0.0
    %132 = vmatpush.msra.mxu0 0.0
    %133 = vmatpush.msra.mxu0 %v114
    %134 = vmatpush.msra.mxu0 %v113
    %135 = vmatpush.msra.mxu0 %v112
    %136 = vmatpush.msra.mxu0 %v111
    %137 = vmatmul.f32.gmra.mxu0 %v116
    %v138 = vpop.f32.mrf.mxu0
    %v139 = vadd.f32 0.0, %v138
    %140 = vmatmul.f32.gmra.mxu0 %v119
    %v141 = vpop.f32.mrf.mxu0
    %v142 = vadd.f32 0.0, %v141
    %143 = vdwg.mxu0
    %146 = vrot.lane.b32.xlu0 %v139, 120
    %v147 = vpop.permute.xlu0 %146
    %148 = vrot.lane.b32.xlu0 %v142, 120
    %v149 = vpop.permute.xlu0 %148
    %152 = vrot.lane.b32.xlu0 %v139, 112
    %v153 = vpop.permute.xlu0 %152
    %154 = vrot.lane.b32.xlu0 %v142, 112
    %v155 = vpop.permute.xlu0 %154
    %158 = vrot.lane.b32.xlu0 %v139, 104
    %v159 = vpop.permute.xlu0 %158
    %160 = vrot.lane.b32.xlu0 %v142, 104
    %v161 = vpop.permute.xlu0 %160
    %v164 = vrot.slane %v153, 4
    %vm165 = vcmask 1047556
    %v166 = vsel %vm165, %v164, %v139
    %v167 = vrot.slane %v139, 4
    %v168 = vsel %vm165, %v153, %v167
    %v170 = vunpack.c.l.s4 1983009808
    %v171 = vunpack.c.0.s8 %v170
    %v172 = vperm.slane %v166, %v171
    %v174 = vunpack.c.l.s4 1983009808
    %v175 = vunpack.c.0.s8 %v174
    %v176 = vperm.slane %v168, %v175
    %v177 = vrot.slane %v159, 4
    %v178 = vsel %vm165, %v177, %v147
    %v179 = vrot.slane %v147, 4
    %v180 = vsel %vm165, %v159, %v179
    %v182 = vunpack.c.l.s4 1983009808
    %v183 = vunpack.c.0.s8 %v182
    %v184 = vperm.slane %v178, %v183
    %v186 = vunpack.c.l.s4 1983009808
    %v187 = vunpack.c.0.s8 %v186
    %v188 = vperm.slane %v180, %v187
    %v189 = vrot.slane %v184, 4
    %v190 = vsel %vm165, %v189, %v172
    %v191 = vrot.slane %v172, 4
    %v192 = vsel %vm165, %v184, %v191
    %v194 = vunpack.c.l.s4 1934713408
    %v195 = vunpack.c.0.s8 %v194
    %v196 = vperm.slane %v190, %v195
    %v198 = vunpack.c.l.s4 1934713408
    %v199 = vunpack.c.0.s8 %v198
    %v200 = vperm.slane %v192, %v199
    %v201 = vrot.slane %v188, 4
    %v202 = vsel %vm165, %v201, %v176
    %v203 = vrot.slane %v176, 4
    %v204 = vsel %vm165, %v188, %v203
    %v206 = vunpack.c.l.s4 1934713408
    %v207 = vunpack.c.0.s8 %v206
    %v208 = vperm.slane %v202, %v207
    %v210 = vunpack.c.l.s4 1934713408
    %v211 = vunpack.c.0.s8 %v210
    %v212 = vperm.slane %v204, %v211
    %v213 = vrot.slane %v196, 4
    %v214 = vsel %vm165, 0.0, %v213
    %v215 = vrot.slane %v200, 4
    %v216 = vsel %vm165, 0.0, %v215
    %v217 = vrot.slane %v208, 4
    %v218 = vsel %vm165, 0.0, %v217
    %v219 = vrot.slane %v212, 4
    %v220 = vsel %vm165, 0.0, %v219
    %v221 = vrot.slane %v155, 4
    %v222 = vsel %vm165, %v221, %v142
    %v223 = vrot.slane %v142, 4
    %v224 = vsel %vm165, %v155, %v223
    %v226 = vunpack.c.l.s4 1983009808
    %v227 = vunpack.c.0.s8 %v226
    %v228 = vperm.slane %v222, %v227
    %v230 = vunpack.c.l.s4 1983009808
    %v231 = vunpack.c.0.s8 %v230
    %v232 = vperm.slane %v224, %v231
    %v233 = vrot.slane %v161, 4
    %v234 = vsel %vm165, %v233, %v149
    %v235 = vrot.slane %v149, 4
    %v236 = vsel %vm165, %v161, %v235
    %v238 = vunpack.c.l.s4 1983009808
    %v239 = vunpack.c.0.s8 %v238
    %v240 = vperm.slane %v234, %v239
    %v242 = vunpack.c.l.s4 1983009808
    %v243 = vunpack.c.0.s8 %v242
    %v244 = vperm.slane %v236, %v243
    %v245 = vrot.slane %v240, 4
    %v246 = vsel %vm165, %v245, %v228
    %v247 = vrot.slane %v228, 4
    %v248 = vsel %vm165, %v240, %v247
    %v250 = vunpack.c.l.s4 1934713408
    %v251 = vunpack.c.0.s8 %v250
    %v252 = vperm.slane %v246, %v251
    %v254 = vunpack.c.l.s4 1934713408
    %v255 = vunpack.c.0.s8 %v254
    %v256 = vperm.slane %v248, %v255
    %v257 = vrot.slane %v244, 4
    %v258 = vsel %vm165, %v257, %v232
    %v259 = vrot.slane %v232, 4
    %v260 = vsel %vm165, %v244, %v259
    %v262 = vunpack.c.l.s4 1934713408
    %v263 = vunpack.c.0.s8 %v262
    %v264 = vperm.slane %v258, %v263
    %v266 = vunpack.c.l.s4 1934713408
    %v267 = vunpack.c.0.s8 %v266
    %v268 = vperm.slane %v260, %v267
    %v269 = vrot.slane %v252, 4
    %v270 = vsel %vm165, 0.0, %v269
    %v271 = vrot.slane %v256, 4
    %v272 = vsel %vm165, 0.0, %v271
    %v273 = vrot.slane %v264, 4
    %v274 = vsel %vm165, 0.0, %v273
    %v275 = vrot.slane %v268, 4
    %v276 = vsel %vm165, 0.0, %v275
    %v277 = vsel %vm165, %v215, %v196
    %v279 = vunpack.c.l.s4 1983009808
    %v280 = vunpack.c.0.s8 %v279
    %v281 = vperm.slane %v277, %v280
    %v282 = vrot.slane %v216, 4
    %v283 = vsel %vm165, %v282, %v214
    %v285 = vunpack.c.l.s4 1983009808
    %v286 = vunpack.c.0.s8 %v285
    %v287 = vperm.slane %v283, %v286
    %v288 = vsel %vm165, %v219, %v208
    %v290 = vunpack.c.l.s4 1983009808
    %v291 = vunpack.c.0.s8 %v290
    %v292 = vperm.slane %v288, %v291
    %v293 = vrot.slane %v220, 4
    %v294 = vsel %vm165, %v293, %v218
    %v296 = vunpack.c.l.s4 1983009808
    %v297 = vunpack.c.0.s8 %v296
    %v298 = vperm.slane %v294, %v297
    %v299 = vrot.slane %v287, 4
    %v300 = vsel %vm165, %v299, %v281
    %v301 = vrot.slane %v281, 4
    %v302 = vsel %vm165, %v287, %v301
    %v304 = vunpack.c.l.s4 1934713408
    %v305 = vunpack.c.0.s8 %v304
    %v306 = vperm.slane %v300, %v305
    %v308 = vunpack.c.l.s4 1934713408
    %v309 = vunpack.c.0.s8 %v308
    %v310 = vperm.slane %v302, %v309
    %v311 = vrot.slane %v298, 4
    %v312 = vsel %vm165, %v311, %v292
    %v313 = vrot.slane %v292, 4
    %v314 = vsel %vm165, %v298, %v313
    %v316 = vunpack.c.l.s4 1934713408
    %v317 = vunpack.c.0.s8 %v316
    %v318 = vperm.slane %v312, %v317
    %v320 = vunpack.c.l.s4 1934713408
    %v321 = vunpack.c.0.s8 %v320
    %v322 = vperm.slane %v314, %v321
    %v323 = vrot.slane %v318, 4
    %v324 = vsel %vm165, %v323, %v306
    %v325 = vrot.slane %v306, 4
    %v326 = vsel %vm165, %v318, %v325
    %v327 = vrot.slane %v322, 4
    %v328 = vsel %vm165, %v327, %v310
    %v329 = vrot.slane %v310, 4
    %v330 = vsel %vm165, %v322, %v329
    %v331 = vsel %vm165, %v271, %v252
    %v333 = vunpack.c.l.s4 1983009808
    %v334 = vunpack.c.0.s8 %v333
    %v335 = vperm.slane %v331, %v334
    %v336 = vrot.slane %v272, 4
    %v337 = vsel %vm165, %v336, %v270
    %v339 = vunpack.c.l.s4 1983009808
    %v340 = vunpack.c.0.s8 %v339
    %v341 = vperm.slane %v337, %v340
    %v342 = vsel %vm165, %v275, %v264
    %v344 = vunpack.c.l.s4 1983009808
    %v345 = vunpack.c.0.s8 %v344
    %v346 = vperm.slane %v342, %v345
    %v347 = vrot.slane %v276, 4
    %v348 = vsel %vm165, %v347, %v274
    %v350 = vunpack.c.l.s4 1983009808
    %v351 = vunpack.c.0.s8 %v350
    %v352 = vperm.slane %v348, %v351
    %v353 = vrot.slane %v341, 4
    %v354 = vsel %vm165, %v353, %v335
    %v355 = vrot.slane %v335, 4
    %v356 = vsel %vm165, %v341, %v355
    %v358 = vunpack.c.l.s4 1934713408
    %v359 = vunpack.c.0.s8 %v358
    %v360 = vperm.slane %v354, %v359
    %v362 = vunpack.c.l.s4 1934713408
    %v363 = vunpack.c.0.s8 %v362
    %v364 = vperm.slane %v356, %v363
    %v365 = vrot.slane %v352, 4
    %v366 = vsel %vm165, %v365, %v346
    %v367 = vrot.slane %v346, 4
    %v368 = vsel %vm165, %v352, %v367
    %v370 = vunpack.c.l.s4 1934713408
    %v371 = vunpack.c.0.s8 %v370
    %v372 = vperm.slane %v366, %v371
    %v374 = vunpack.c.l.s4 1934713408
    %v375 = vunpack.c.0.s8 %v374
    %v376 = vperm.slane %v368, %v375
    %v377 = vrot.slane %v372, 4
    %v378 = vsel %vm165, %v377, %v360
    %v379 = vrot.slane %v360, 4
    %v380 = vsel %vm165, %v372, %v379
    %v381 = vrot.slane %v376, 4
    %v382 = vsel %vm165, %v381, %v364
    %v383 = vrot.slane %v364, 4
    %v384 = vsel %vm165, %v376, %v383
    %385 = vrot.lane.b32.xlu0 %v139, 96
    %v386 = vpop.permute.xlu0 %385
    %387 = vrot.lane.b32.xlu0 %v142, 96
    %v388 = vpop.permute.xlu0 %387
    %389 = vrot.lane.b32.xlu0 %v147, 96
    %v390 = vpop.permute.xlu0 %389
    %391 = vrot.lane.b32.xlu0 %v149, 96
    %v392 = vpop.permute.xlu0 %391
    %393 = vrot.lane.b32.xlu0 %v153, 96
    %v394 = vpop.permute.xlu0 %393
    %395 = vrot.lane.b32.xlu0 %v155, 96
    %v396 = vpop.permute.xlu0 %395
    %397 = vrot.lane.b32.xlu0 %v159, 96
    %v398 = vpop.permute.xlu0 %397
    %399 = vrot.lane.b32.xlu0 %v161, 96
    %v400 = vpop.permute.xlu0 %399
    %v409 = vrot.slane %v394, 4
    %v410 = vsel %vm165, %v409, %v386
    %v411 = vrot.slane %v386, 4
    %v412 = vsel %vm165, %v394, %v411
    %v414 = vunpack.c.l.s4 1983009808
    %v415 = vunpack.c.0.s8 %v414
    %v416 = vperm.slane %v410, %v415
    %v418 = vunpack.c.l.s4 1983009808
    %v419 = vunpack.c.0.s8 %v418
    %v420 = vperm.slane %v412, %v419
    %v421 = vrot.slane %v398, 4
    %v422 = vsel %vm165, %v421, %v390
    %v423 = vrot.slane %v390, 4
    %v424 = vsel %vm165, %v398, %v423
    %v426 = vunpack.c.l.s4 1983009808
    %v427 = vunpack.c.0.s8 %v426
    %v428 = vperm.slane %v422, %v427
    %v430 = vunpack.c.l.s4 1983009808
    %v431 = vunpack.c.0.s8 %v430
    %v432 = vperm.slane %v424, %v431
    %v433 = vrot.slane %v428, 4
    %v434 = vsel %vm165, %v433, %v416
    %v435 = vrot.slane %v416, 4
    %v436 = vsel %vm165, %v428, %v435
    %v438 = vunpack.c.l.s4 1934713408
    %v439 = vunpack.c.0.s8 %v438
    %v440 = vperm.slane %v434, %v439
    %v442 = vunpack.c.l.s4 1934713408
    %v443 = vunpack.c.0.s8 %v442
    %v444 = vperm.slane %v436, %v443
    %v445 = vrot.slane %v432, 4
    %v446 = vsel %vm165, %v445, %v420
    %v447 = vrot.slane %v420, 4
    %v448 = vsel %vm165, %v432, %v447
    %v450 = vunpack.c.l.s4 1934713408
    %v451 = vunpack.c.0.s8 %v450
    %v452 = vperm.slane %v446, %v451
    %v454 = vunpack.c.l.s4 1934713408
    %v455 = vunpack.c.0.s8 %v454
    %v456 = vperm.slane %v448, %v455
    %v457 = vrot.slane %v440, 4
    %v458 = vsel %vm165, 0.0, %v457
    %v459 = vrot.slane %v444, 4
    %v460 = vsel %vm165, 0.0, %v459
    %v461 = vrot.slane %v452, 4
    %v462 = vsel %vm165, 0.0, %v461
    %v463 = vrot.slane %v456, 4
    %v464 = vsel %vm165, 0.0, %v463
    %v465 = vrot.slane %v396, 4
    %v466 = vsel %vm165, %v465, %v388
    %v467 = vrot.slane %v388, 4
    %v468 = vsel %vm165, %v396, %v467
    %v470 = vunpack.c.l.s4 1983009808
    %v471 = vunpack.c.0.s8 %v470
    %v472 = vperm.slane %v466, %v471
    %v474 = vunpack.c.l.s4 1983009808
    %v475 = vunpack.c.0.s8 %v474
    %v476 = vperm.slane %v468, %v475
    %v477 = vrot.slane %v400, 4
    %v478 = vsel %vm165, %v477, %v392
    %v479 = vrot.slane %v392, 4
    %v480 = vsel %vm165, %v400, %v479
    %v482 = vunpack.c.l.s4 1983009808
    %v483 = vunpack.c.0.s8 %v482
    %v484 = vperm.slane %v478, %v483
    %v486 = vunpack.c.l.s4 1983009808
    %v487 = vunpack.c.0.s8 %v486
    %v488 = vperm.slane %v480, %v487
    %v489 = vrot.slane %v484, 4
    %v490 = vsel %vm165, %v489, %v472
    %v491 = vrot.slane %v472, 4
    %v492 = vsel %vm165, %v484, %v491
    %v494 = vunpack.c.l.s4 1934713408
    %v495 = vunpack.c.0.s8 %v494
    %v496 = vperm.slane %v490, %v495
    %v498 = vunpack.c.l.s4 1934713408
    %v499 = vunpack.c.0.s8 %v498
    %v500 = vperm.slane %v492, %v499
    %v501 = vrot.slane %v488, 4
    %v502 = vsel %vm165, %v501, %v476
    %v503 = vrot.slane %v476, 4
    %v504 = vsel %vm165, %v488, %v503
    %v506 = vunpack.c.l.s4 1934713408
    %v507 = vunpack.c.0.s8 %v506
    %v508 = vperm.slane %v502, %v507
    %v510 = vunpack.c.l.s4 1934713408
    %v511 = vunpack.c.0.s8 %v510
    %v512 = vperm.slane %v504, %v511
    %v513 = vrot.slane %v496, 4
    %v514 = vsel %vm165, 0.0, %v513
    %v515 = vrot.slane %v500, 4
    %v516 = vsel %vm165, 0.0, %v515
    %v517 = vrot.slane %v508, 4
    %v518 = vsel %vm165, 0.0, %v517
    %v519 = vrot.slane %v512, 4
    %v520 = vsel %vm165, 0.0, %v519
    %v521 = vsel %vm165, %v459, %v440
    %v523 = vunpack.c.l.s4 1983009808
    %v524 = vunpack.c.0.s8 %v523
    %v525 = vperm.slane %v521, %v524
    %v526 = vrot.slane %v460, 4
    %v527 = vsel %vm165, %v526, %v458
    %v529 = vunpack.c.l.s4 1983009808
    %v530 = vunpack.c.0.s8 %v529
    %v531 = vperm.slane %v527, %v530
    %v532 = vsel %vm165, %v463, %v452
    %v534 = vunpack.c.l.s4 1983009808
    %v535 = vunpack.c.0.s8 %v534
    %v536 = vperm.slane %v532, %v535
    %v537 = vrot.slane %v464, 4
    %v538 = vsel %vm165, %v537, %v462
    %v540 = vunpack.c.l.s4 1983009808
    %v541 = vunpack.c.0.s8 %v540
    %v542 = vperm.slane %v538, %v541
    %v543 = vrot.slane %v531, 4
    %v544 = vsel %vm165, %v543, %v525
    %v545 = vrot.slane %v525, 4
    %v546 = vsel %vm165, %v531, %v545
    %v548 = vunpack.c.l.s4 1934713408
    %v549 = vunpack.c.0.s8 %v548
    %v550 = vperm.slane %v544, %v549
    %v552 = vunpack.c.l.s4 1934713408
    %v553 = vunpack.c.0.s8 %v552
    %v554 = vperm.slane %v546, %v553
    %v555 = vrot.slane %v542, 4
    %v556 = vsel %vm165, %v555, %v536
    %v557 = vrot.slane %v536, 4
    %v558 = vsel %vm165, %v542, %v557
    %v560 = vunpack.c.l.s4 1934713408
    %v561 = vunpack.c.0.s8 %v560
    %v562 = vperm.slane %v556, %v561
    %v564 = vunpack.c.l.s4 1934713408
    %v565 = vunpack.c.0.s8 %v564
    %v566 = vperm.slane %v558, %v565
    %v567 = vrot.slane %v562, 4
    %v568 = vsel %vm165, %v567, %v550
    %v569 = vrot.slane %v550, 4
    %v570 = vsel %vm165, %v562, %v569
    %v571 = vrot.slane %v566, 4
    %v572 = vsel %vm165, %v571, %v554
    %v573 = vrot.slane %v554, 4
    %v574 = vsel %vm165, %v566, %v573
    %v575 = vsel %vm165, %v515, %v496
    %v577 = vunpack.c.l.s4 1983009808
    %v578 = vunpack.c.0.s8 %v577
    %v579 = vperm.slane %v575, %v578
    %v580 = vrot.slane %v516, 4
    %v581 = vsel %vm165, %v580, %v514
    %v583 = vunpack.c.l.s4 1983009808
    %v584 = vunpack.c.0.s8 %v583
    %v585 = vperm.slane %v581, %v584
    %v586 = vsel %vm165, %v519, %v508
    %v588 = vunpack.c.l.s4 1983009808
    %v589 = vunpack.c.0.s8 %v588
    %v590 = vperm.slane %v586, %v589
    %v591 = vrot.slane %v520, 4
    %v592 = vsel %vm165, %v591, %v518
    %v594 = vunpack.c.l.s4 1983009808
    %v595 = vunpack.c.0.s8 %v594
    %v596 = vperm.slane %v592, %v595
    %v597 = vrot.slane %v585, 4
    %v598 = vsel %vm165, %v597, %v579
    %v599 = vrot.slane %v579, 4
    %v600 = vsel %vm165, %v585, %v599
    %v602 = vunpack.c.l.s4 1934713408
    %v603 = vunpack.c.0.s8 %v602
    %v604 = vperm.slane %v598, %v603
    %v606 = vunpack.c.l.s4 1934713408
    %v607 = vunpack.c.0.s8 %v606
    %v608 = vperm.slane %v600, %v607
    %v609 = vrot.slane %v596, 4
    %v610 = vsel %vm165, %v609, %v590
    %v611 = vrot.slane %v590, 4
    %v612 = vsel %vm165, %v596, %v611
    %v614 = vunpack.c.l.s4 1934713408
    %v615 = vunpack.c.0.s8 %v614
    %v616 = vperm.slane %v610, %v615
    %v618 = vunpack.c.l.s4 1934713408
    %v619 = vunpack.c.0.s8 %v618
    %v620 = vperm.slane %v612, %v619
    %v621 = vrot.slane %v616, 4
    %v622 = vsel %vm165, %v621, %v604
    %v623 = vrot.slane %v604, 4
    %v624 = vsel %vm165, %v616, %v623
    %v625 = vrot.slane %v620, 4
    %v626 = vsel %vm165, %v625, %v608
    %v627 = vrot.slane %v608, 4
    %v628 = vsel %vm165, %v620, %v627
    %629 = vrot.lane.b32.xlu0 %v139, 64
    %v630 = vpop.permute.xlu0 %629
    %631 = vrot.lane.b32.xlu0 %v142, 64
    %v632 = vpop.permute.xlu0 %631
    %633 = vrot.lane.b32.xlu0 %v147, 64
    %v634 = vpop.permute.xlu0 %633
    %635 = vrot.lane.b32.xlu0 %v149, 64
    %v636 = vpop.permute.xlu0 %635
    %637 = vrot.lane.b32.xlu0 %v153, 64
    %v638 = vpop.permute.xlu0 %637
    %639 = vrot.lane.b32.xlu0 %v155, 64
    %v640 = vpop.permute.xlu0 %639
    %641 = vrot.lane.b32.xlu0 %v159, 64
    %v642 = vpop.permute.xlu0 %641
    %643 = vrot.lane.b32.xlu0 %v161, 64
    %v644 = vpop.permute.xlu0 %643
    %v653 = vrot.slane %v638, 4
    %v654 = vsel %vm165, %v653, %v630
    %v655 = vrot.slane %v630, 4
    %v656 = vsel %vm165, %v638, %v655
    %v658 = vunpack.c.l.s4 1983009808
    %v659 = vunpack.c.0.s8 %v658
    %v660 = vperm.slane %v654, %v659
    %v662 = vunpack.c.l.s4 1983009808
    %v663 = vunpack.c.0.s8 %v662
    %v664 = vperm.slane %v656, %v663
    %v665 = vrot.slane %v642, 4
    %v666 = vsel %vm165, %v665, %v634
    %v667 = vrot.slane %v634, 4
    %v668 = vsel %vm165, %v642, %v667
    %v670 = vunpack.c.l.s4 1983009808
    %v671 = vunpack.c.0.s8 %v670
    %v672 = vperm.slane %v666, %v671
    %v674 = vunpack.c.l.s4 1983009808
    %v675 = vunpack.c.0.s8 %v674
    %v676 = vperm.slane %v668, %v675
    %v677 = vrot.slane %v672, 4
    %v678 = vsel %vm165, %v677, %v660
    %v679 = vrot.slane %v660, 4
    %v680 = vsel %vm165, %v672, %v679
    %v682 = vunpack.c.l.s4 1934713408
    %v683 = vunpack.c.0.s8 %v682
    %v684 = vperm.slane %v678, %v683
    %v686 = vunpack.c.l.s4 1934713408
    %v687 = vunpack.c.0.s8 %v686
    %v688 = vperm.slane %v680, %v687
    %v689 = vrot.slane %v676, 4
    %v690 = vsel %vm165, %v689, %v664
    %v691 = vrot.slane %v664, 4
    %v692 = vsel %vm165, %v676, %v691
    %v694 = vunpack.c.l.s4 1934713408
    %v695 = vunpack.c.0.s8 %v694
    %v696 = vperm.slane %v690, %v695
    %v698 = vunpack.c.l.s4 1934713408
    %v699 = vunpack.c.0.s8 %v698
    %v700 = vperm.slane %v692, %v699
    %v701 = vrot.slane %v684, 4
    %v702 = vsel %vm165, 0.0, %v701
    %v703 = vrot.slane %v688, 4
    %v704 = vsel %vm165, 0.0, %v703
    %v705 = vrot.slane %v696, 4
    %v706 = vsel %vm165, 0.0, %v705
    %v707 = vrot.slane %v700, 4
    %v708 = vsel %vm165, 0.0, %v707
    %v709 = vrot.slane %v640, 4
    %v710 = vsel %vm165, %v709, %v632
    %v711 = vrot.slane %v632, 4
    %v712 = vsel %vm165, %v640, %v711
    %v714 = vunpack.c.l.s4 1983009808
    %v715 = vunpack.c.0.s8 %v714
    %v716 = vperm.slane %v710, %v715
    %v718 = vunpack.c.l.s4 1983009808
    %v719 = vunpack.c.0.s8 %v718
    %v720 = vperm.slane %v712, %v719
    %v721 = vrot.slane %v644, 4
    %v722 = vsel %vm165, %v721, %v636
    %v723 = vrot.slane %v636, 4
    %v724 = vsel %vm165, %v644, %v723
    %v726 = vunpack.c.l.s4 1983009808
    %v727 = vunpack.c.0.s8 %v726
    %v728 = vperm.slane %v722, %v727
    %v730 = vunpack.c.l.s4 1983009808
    %v731 = vunpack.c.0.s8 %v730
    %v732 = vperm.slane %v724, %v731
    %v733 = vrot.slane %v728, 4
    %v734 = vsel %vm165, %v733, %v716
    %v735 = vrot.slane %v716, 4
    %v736 = vsel %vm165, %v728, %v735
    %v738 = vunpack.c.l.s4 1934713408
    %v739 = vunpack.c.0.s8 %v738
    %v740 = vperm.slane %v734, %v739
    %v742 = vunpack.c.l.s4 1934713408
    %v743 = vunpack.c.0.s8 %v742
    %v744 = vperm.slane %v736, %v743
    %v745 = vrot.slane %v732, 4
    %v746 = vsel %vm165, %v745, %v720
    %v747 = vrot.slane %v720, 4
    %v748 = vsel %vm165, %v732, %v747
    %v750 = vunpack.c.l.s4 1934713408
    %v751 = vunpack.c.0.s8 %v750
    %v752 = vperm.slane %v746, %v751
    %v754 = vunpack.c.l.s4 1934713408
    %v755 = vunpack.c.0.s8 %v754
    %v756 = vperm.slane %v748, %v755
    %v757 = vrot.slane %v740, 4
    %v758 = vsel %vm165, 0.0, %v757
    %v759 = vrot.slane %v744, 4
    %v760 = vsel %vm165, 0.0, %v759
    %v761 = vrot.slane %v752, 4
    %v762 = vsel %vm165, 0.0, %v761
    %v763 = vrot.slane %v756, 4
    %v764 = vsel %vm165, 0.0, %v763
    %v765 = vsel %vm165, %v703, %v684
    %v767 = vunpack.c.l.s4 1983009808
    %v768 = vunpack.c.0.s8 %v767
    %v769 = vperm.slane %v765, %v768
    %v770 = vrot.slane %v704, 4
    %v771 = vsel %vm165, %v770, %v702
    %v773 = vunpack.c.l.s4 1983009808
    %v774 = vunpack.c.0.s8 %v773
    %v775 = vperm.slane %v771, %v774
    %v776 = vsel %vm165, %v707, %v696
    %v778 = vunpack.c.l.s4 1983009808
    %v779 = vunpack.c.0.s8 %v778
    %v780 = vperm.slane %v776, %v779
    %v781 = vrot.slane %v708, 4
    %v782 = vsel %vm165, %v781, %v706
    %v784 = vunpack.c.l.s4 1983009808
    %v785 = vunpack.c.0.s8 %v784
    %v786 = vperm.slane %v782, %v785
    %v787 = vrot.slane %v775, 4
    %v788 = vsel %vm165, %v787, %v769
    %v789 = vrot.slane %v769, 4
    %v790 = vsel %vm165, %v775, %v789
    %v792 = vunpack.c.l.s4 1934713408
    %v793 = vunpack.c.0.s8 %v792
    %v794 = vperm.slane %v788, %v793
    %v796 = vunpack.c.l.s4 1934713408
    %v797 = vunpack.c.0.s8 %v796
    %v798 = vperm.slane %v790, %v797
    %v799 = vrot.slane %v786, 4
    %v800 = vsel %vm165, %v799, %v780
    %v801 = vrot.slane %v780, 4
    %v802 = vsel %vm165, %v786, %v801
    %v804 = vunpack.c.l.s4 1934713408
    %v805 = vunpack.c.0.s8 %v804
    %v806 = vperm.slane %v800, %v805
    %v808 = vunpack.c.l.s4 1934713408
    %v809 = vunpack.c.0.s8 %v808
    %v810 = vperm.slane %v802, %v809
    %v811 = vrot.slane %v806, 4
    %v812 = vsel %vm165, %v811, %v794
    %v813 = vrot.slane %v794, 4
    %v814 = vsel %vm165, %v806, %v813
    %v815 = vrot.slane %v810, 4
    %v816 = vsel %vm165, %v815, %v798
    %v817 = vrot.slane %v798, 4
    %v818 = vsel %vm165, %v810, %v817
    %v819 = vsel %vm165, %v759, %v740
    %v821 = vunpack.c.l.s4 1983009808
    %v822 = vunpack.c.0.s8 %v821
    %v823 = vperm.slane %v819, %v822
    %v824 = vrot.slane %v760, 4
    %v825 = vsel %vm165, %v824, %v758
    %v827 = vunpack.c.l.s4 1983009808
    %v828 = vunpack.c.0.s8 %v827
    %v829 = vperm.slane %v825, %v828
    %v830 = vsel %vm165, %v763, %v752
    %v832 = vunpack.c.l.s4 1983009808
    %v833 = vunpack.c.0.s8 %v832
    %v834 = vperm.slane %v830, %v833
    %v835 = vrot.slane %v764, 4
    %v836 = vsel %vm165, %v835, %v762
    %v838 = vunpack.c.l.s4 1983009808
    %v839 = vunpack.c.0.s8 %v838
    %v840 = vperm.slane %v836, %v839
    %v841 = vrot.slane %v829, 4
    %v842 = vsel %vm165, %v841, %v823
    %v843 = vrot.slane %v823, 4
    %v844 = vsel %vm165, %v829, %v843
    %v846 = vunpack.c.l.s4 1934713408
    %v847 = vunpack.c.0.s8 %v846
    %v848 = vperm.slane %v842, %v847
    %v850 = vunpack.c.l.s4 1934713408
    %v851 = vunpack.c.0.s8 %v850
    %v852 = vperm.slane %v844, %v851
    %v853 = vrot.slane %v840, 4
    %v854 = vsel %vm165, %v853, %v834
    %v855 = vrot.slane %v834, 4
    %v856 = vsel %vm165, %v840, %v855
    %v858 = vunpack.c.l.s4 1934713408
    %v859 = vunpack.c.0.s8 %v858
    %v860 = vperm.slane %v854, %v859
    %v862 = vunpack.c.l.s4 1934713408
    %v863 = vunpack.c.0.s8 %v862
    %v864 = vperm.slane %v856, %v863
    %v865 = vrot.slane %v860, 4
    %v866 = vsel %vm165, %v865, %v848
    %v867 = vrot.slane %v848, 4
    %v868 = vsel %vm165, %v860, %v867
    %v869 = vrot.slane %v864, 4
    %v870 = vsel %vm165, %v869, %v852
    %v871 = vrot.slane %v852, 4
    %v872 = vsel %vm165, %v864, %v871
    %v873 = vld [vmem:[%s1] sm:$0xff]
    %v874 = vld [vmem:[%s1 + $0x8] sm:$0xff]
    %vm875 = vcmask 64512
    %v877 = vsel %vm875, %v324, 0
    %v880 = vsel %vm875, %v378, 0
    %v883 = vsel %vm875, %v568, 0
    %v886 = vsel %vm875, %v622, 0
    %888 = vmatpush.xpose.msra.mxu0 0.0
    %889 = vmatpush.xpose.msra.mxu0 0.0
    %890 = vmatpush.xpose.msra.mxu0 0.0
    %891 = vmatpush.xpose.msra.mxu0 0.0
    %892 = vmatpush.xpose.msra.mxu0 0.0
    %893 = vmatpush.xpose.msra.mxu0 0.0
    %894 = vmatpush.xpose.msra.mxu0 0.0
    %895 = vmatpush.xpose.msra.mxu0 0.0
    %896 = vmatpush.xpose.msra.mxu0 0.0
    %897 = vmatpush.xpose.msra.mxu0 0.0
    %898 = vmatpush.xpose.msra.mxu0 0.0
    %899 = vmatpush.xpose.msra.mxu0 0.0
    %900 = vmatpush.xpose.msra.mxu0 0.0
    %901 = vmatpush.xpose.msra.mxu0 0.0
    %902 = vmatpush.xpose.msra.mxu0 %v886
    %903 = vmatpush.xpose.msra.mxu0 %v883
    %904 = vmatmul.f32.gmra.mxu0 %v877
    %v905 = vpop.f32.mrf.mxu0
    %v906 = vadd.f32 %v873, %v905
    %907 = vmatmul.f32.gmra.mxu0 %v880
    %v908 = vpop.f32.mrf.mxu0
    %v909 = vadd.f32 %v874, %v908
    %910 = vdwg.mxu0
    %v912 = vsel %vm875, %v326, 0
    %v915 = vsel %vm875, %v380, 0
    %v918 = vsel %vm875, %v570, 0
    %v921 = vsel %vm875, %v624, 0
    %923 = vmatpush.xpose.msra.mxu0 0.0
    %924 = vmatpush.xpose.msra.mxu0 0.0
    %925 = vmatpush.xpose.msra.mxu0 0.0
    %926 = vmatpush.xpose.msra.mxu0 0.0
    %927 = vmatpush.xpose.msra.mxu0 0.0
    %928 = vmatpush.xpose.msra.mxu0 0.0
    %929 = vmatpush.xpose.msra.mxu0 0.0
    %930 = vmatpush.xpose.msra.mxu0 0.0
    %931 = vmatpush.xpose.msra.mxu0 0.0
    %932 = vmatpush.xpose.msra.mxu0 0.0
    %933 = vmatpush.xpose.msra.mxu0 0.0
    %934 = vmatpush.xpose.msra.mxu0 0.0
    %935 = vmatpush.xpose.msra.mxu0 0.0
    %936 = vmatpush.xpose.msra.mxu0 0.0
    %937 = vmatpush.xpose.msra.mxu0 %v921
    %938 = vmatpush.xpose.msra.mxu0 %v918
    %939 = vmatmul.f32.gmra.mxu0 %v912
    %v940 = vpop.f32.mrf.mxu0
    %v941 = vadd.f32 %v873, %v940
    %942 = vmatmul.f32.gmra.mxu0 %v915
    %v943 = vpop.f32.mrf.mxu0
    %v944 = vadd.f32 %v874, %v943
    %945 = vdwg.mxu0
    %v947 = vsel %vm875, %v328, 0
    %v950 = vsel %vm875, %v382, 0
    %v953 = vsel %vm875, %v572, 0
    %v956 = vsel %vm875, %v626, 0
    %958 = vmatpush.xpose.msra.mxu0 0.0
    %959 = vmatpush.xpose.msra.mxu0 0.0
    %960 = vmatpush.xpose.msra.mxu0 0.0
    %961 = vmatpush.xpose.msra.mxu0 0.0
    %962 = vmatpush.xpose.msra.mxu0 0.0
    %963 = vmatpush.xpose.msra.mxu0 0.0
    %964 = vmatpush.xpose.msra.mxu0 0.0
    %965 = vmatpush.xpose.msra.mxu0 0.0
    %966 = vmatpush.xpose.msra.mxu0 0.0
    %967 = vmatpush.xpose.msra.mxu0 0.0
    %968 = vmatpush.xpose.msra.mxu0 0.0
    %969 = vmatpush.xpose.msra.mxu0 0.0
    %970 = vmatpush.xpose.msra.mxu0 0.0
    %971 = vmatpush.xpose.msra.mxu0 0.0
    %972 = vmatpush.xpose.msra.mxu0 %v956
    %973 = vmatpush.xpose.msra.mxu0 %v953
    %974 = vmatmul.f32.gmra.mxu0 %v947
    %v975 = vpop.f32.mrf.mxu0
    %v976 = vadd.f32 %v873, %v975
    %977 = vmatmul.f32.gmra.mxu0 %v950
    %v978 = vpop.f32.mrf.mxu0
    %v979 = vadd.f32 %v874, %v978
    %980 = vdwg.mxu0
    %v982 = vsel %vm875, %v330, 0
    %v985 = vsel %vm875, %v384, 0
    %v988 = vsel %vm875, %v574, 0
    %v991 = vsel %vm875, %v628, 0
    %993 = vmatpush.xpose.msra.mxu0 0.0
    %994 = vmatpush.xpose.msra.mxu0 0.0
    %995 = vmatpush.xpose.msra.mxu0 0.0
    %996 = vmatpush.xpose.msra.mxu0 0.0
    %997 = vmatpush.xpose.msra.mxu0 0.0
    %998 = vmatpush.xpose.msra.mxu0 0.0
    %999 = vmatpush.xpose.msra.mxu0 0.0
    %1000 = vmatpush.xpose.msra.mxu0 0.0
    %1001 = vmatpush.xpose.msra.mxu0 0.0
    %1002 = vmatpush.xpose.msra.mxu0 0.0
    %1003 = vmatpush.xpose.msra.mxu0 0.0
    %1004 = vmatpush.xpose.msra.mxu0 0.0
    %1005 = vmatpush.xpose.msra.mxu0 0.0
    %1006 = vmatpush.xpose.msra.mxu0 0.0
    %1007 = vmatpush.xpose.msra.mxu0 %v991
    %1008 = vmatpush.xpose.msra.mxu0 %v988
    %1009 = vmatmul.f32.gmra.mxu0 %v982
    %v1010 = vpop.f32.mrf.mxu0
    %v1011 = vadd.f32 %v873, %v1010
    %1012 = vmatmul.f32.gmra.mxu0 %v985
    %v1013 = vpop.f32.mrf.mxu0
    %v1014 = vadd.f32 %v874, %v1013
    %1015 = vdwg.mxu0
    %v1016 = vmul.f32 %v906, 1.442695
    %v1017 = vpow.pop %v1016
    %v1018 = vmul.f32 %v909, 1.442695
    %v1019 = vpow.pop %v1018
    %v1020 = vmul.f32 %v941, 1.442695
    %v1021 = vpow.pop %v1020
    %v1022 = vmul.f32 %v944, 1.442695
    %v1023 = vpow.pop %v1022
    %v1024 = vmul.f32 %v976, 1.442695
    %v1025 = vpow.pop %v1024
    %v1026 = vmul.f32 %v979, 1.442695
    %v1027 = vpow.pop %v1026
    %v1028 = vmul.f32 %v1011, 1.442695
    %v1029 = vpow.pop %v1028
    %v1030 = vmul.f32 %v1014, 1.442695
    %v1031 = vpow.pop %v1030
    %vm1032 = vcmask 130048
    %v1033 = vsel %vm1032, %v1017, 0.0
    %1034 = vadd.xlane.f32.xlu0 %v1033
    %v1035 = vpop.xlane.xlu0 %1034
    %v1036 = vsel %vm1032, %v1019, 0.0
    %1037 = vadd.xlane.f32.xlu0 %v1036
    %v1038 = vpop.xlane.xlu0 %1037
    %v1039 = vsel %vm1032, %v1021, 0.0
    %1040 = vadd.xlane.f32.xlu0 %v1039
    %v1041 = vpop.xlane.xlu0 %1040
    %v1042 = vsel %vm1032, %v1023, 0.0
    %1043 = vadd.xlane.f32.xlu0 %v1042
    %v1044 = vpop.xlane.xlu0 %1043
    %v1045 = vsel %vm1032, %v1025, 0.0
    %1046 = vadd.xlane.f32.xlu0 %v1045
    %v1047 = vpop.xlane.xlu0 %1046
    %v1048 = vsel %vm1032, %v1027, 0.0
    %1049 = vadd.xlane.f32.xlu0 %v1048
    %v1050 = vpop.xlane.xlu0 %1049
    %v1051 = vsel %vm1032, %v1029, 0.0
    %1052 = vadd.xlane.f32.xlu0 %v1051
    %v1053 = vpop.xlane.xlu0 %1052
    %v1054 = vsel %vm1032, %v1031, 0.0
    %1055 = vadd.xlane.f32.xlu0 %v1054
    %v1056 = vpop.xlane.xlu0 %1055
    %v1057 = vrcp.pop %v1035
    %v1058 = vmul.f32 %v1035, %v1057
    %v1059 = vsub.f32 1.0, %v1058
    %v1060 = vmul.f32 %v1057, %v1059
    %v1061 = vadd.f32 %v1057, %v1060
    %vm1062 = vweird.f32 %v1035
    %vm1063 = vweird.f32 %v1057
    %vm1064 = vmor %vm1062, %vm1063
    %v1065 = vsel %vm1064, %v1057, %v1061
    %v1066 = vand.u32 2147483647, %v1035
    %vm1067 = vcmp.eq.f32.partialorder %v1066, 8.507059e+37
    %v1068 = vand.u32 %v1035, 2147483648
    %v1069 = vor.u32 1.1754944e-38, %v1068
    %v1070 = vsel %vm1067, %v1069, %v1065
    %v1071 = vmul.f32 %v1017, %v1070
    %v1072 = vrcp.pop %v1038
    %v1073 = vmul.f32 %v1038, %v1072
    %v1074 = vsub.f32 1.0, %v1073
    %v1075 = vmul.f32 %v1072, %v1074
    %v1076 = vadd.f32 %v1072, %v1075
    %vm1077 = vweird.f32 %v1038
    %vm1078 = vweird.f32 %v1072
    %vm1079 = vmor %vm1077, %vm1078
    %v1080 = vsel %vm1079, %v1072, %v1076
    %v1081 = vand.u32 2147483647, %v1038
    %vm1082 = vcmp.eq.f32.partialorder %v1081, 8.507059e+37
    %v1083 = vand.u32 %v1038, 2147483648
    %v1084 = vor.u32 1.1754944e-38, %v1083
    %v1085 = vsel %vm1082, %v1084, %v1080
    %v1086 = vmul.f32 %v1019, %v1085
    %v1087 = vrcp.pop %v1041
    %v1088 = vmul.f32 %v1041, %v1087
    %v1089 = vsub.f32 1.0, %v1088
    %v1090 = vmul.f32 %v1087, %v1089
    %v1091 = vadd.f32 %v1087, %v1090
    %vm1092 = vweird.f32 %v1041
    %vm1093 = vweird.f32 %v1087
    %vm1094 = vmor %vm1092, %vm1093
    %v1095 = vsel %vm1094, %v1087, %v1091
    %v1096 = vand.u32 2147483647, %v1041
    %vm1097 = vcmp.eq.f32.partialorder %v1096, 8.507059e+37
    %v1098 = vand.u32 %v1041, 2147483648
    %v1099 = vor.u32 1.1754944e-38, %v1098
    %v1100 = vsel %vm1097, %v1099, %v1095
    %v1101 = vmul.f32 %v1021, %v1100
    %v1102 = vrcp.pop %v1044
    %v1103 = vmul.f32 %v1044, %v1102
    %v1104 = vsub.f32 1.0, %v1103
    %v1105 = vmul.f32 %v1102, %v1104
    %v1106 = vadd.f32 %v1102, %v1105
    %vm1107 = vweird.f32 %v1044
    %vm1108 = vweird.f32 %v1102
    %vm1109 = vmor %vm1107, %vm1108
    %v1110 = vsel %vm1109, %v1102, %v1106
    %v1111 = vand.u32 2147483647, %v1044
    %vm1112 = vcmp.eq.f32.partialorder %v1111, 8.507059e+37
    %v1113 = vand.u32 %v1044, 2147483648
    %v1114 = vor.u32 1.1754944e-38, %v1113
    %v1115 = vsel %vm1112, %v1114, %v1110
    %v1116 = vmul.f32 %v1023, %v1115
    %v1117 = vrcp.pop %v1047
    %v1118 = vmul.f32 %v1047, %v1117
    %v1119 = vsub.f32 1.0, %v1118
    %v1120 = vmul.f32 %v1117, %v1119
    %v1121 = vadd.f32 %v1117, %v1120
    %vm1122 = vweird.f32 %v1047
    %vm1123 = vweird.f32 %v1117
    %vm1124 = vmor %vm1122, %vm1123
    %v1125 = vsel %vm1124, %v1117, %v1121
    %v1126 = vand.u32 2147483647, %v1047
    %vm1127 = vcmp.eq.f32.partialorder %v1126, 8.507059e+37
    %v1128 = vand.u32 %v1047, 2147483648
    %v1129 = vor.u32 1.1754944e-38, %v1128
    %v1130 = vsel %vm1127, %v1129, %v1125
    %v1131 = vmul.f32 %v1025, %v1130
    %v1132 = vrcp.pop %v1050
    %v1133 = vmul.f32 %v1050, %v1132
    %v1134 = vsub.f32 1.0, %v1133
    %v1135 = vmul.f32 %v1132, %v1134
    %v1136 = vadd.f32 %v1132, %v1135
    %vm1137 = vweird.f32 %v1050
    %vm1138 = vweird.f32 %v1132
    %vm1139 = vmor %vm1137, %vm1138
    %v1140 = vsel %vm1139, %v1132, %v1136
    %v1141 = vand.u32 2147483647, %v1050
    %vm1142 = vcmp.eq.f32.partialorder %v1141, 8.507059e+37
    %v1143 = vand.u32 %v1050, 2147483648
    %v1144 = vor.u32 1.1754944e-38, %v1143
    %v1145 = vsel %vm1142, %v1144, %v1140
    %v1146 = vmul.f32 %v1027, %v1145
    %v1147 = vrcp.pop %v1053
    %v1148 = vmul.f32 %v1053, %v1147
    %v1149 = vsub.f32 1.0, %v1148
    %v1150 = vmul.f32 %v1147, %v1149
    %v1151 = vadd.f32 %v1147, %v1150
    %vm1152 = vweird.f32 %v1053
    %vm1153 = vweird.f32 %v1147
    %vm1154 = vmor %vm1152, %vm1153
    %v1155 = vsel %vm1154, %v1147, %v1151
    %v1156 = vand.u32 2147483647, %v1053
    %vm1157 = vcmp.eq.f32.partialorder %v1156, 8.507059e+37
    %v1158 = vand.u32 %v1053, 2147483648
    %v1159 = vor.u32 1.1754944e-38, %v1158
    %v1160 = vsel %vm1157, %v1159, %v1155
    %v1161 = vmul.f32 %v1029, %v1160
    %v1162 = vrcp.pop %v1056
    %v1163 = vmul.f32 %v1056, %v1162
    %v1164 = vsub.f32 1.0, %v1163
    %v1165 = vmul.f32 %v1162, %v1164
    %v1166 = vadd.f32 %v1162, %v1165
    %vm1167 = vweird.f32 %v1056
    %vm1168 = vweird.f32 %v1162
    %vm1169 = vmor %vm1167, %vm1168
    %v1170 = vsel %vm1169, %v1162, %v1166
    %v1171 = vand.u32 2147483647, %v1056
    %vm1172 = vcmp.eq.f32.partialorder %v1171, 8.507059e+37
    %v1173 = vand.u32 %v1056, 2147483648
    %v1174 = vor.u32 1.1754944e-38, %v1173
    %v1175 = vsel %vm1172, %v1174, %v1170
    %v1176 = vmul.f32 %v1031, %v1175
    %v1178 = vsel %vm1032, %v1071, 0
    %v1181 = vsel %vm1032, %v1086, 0
    %1183 = vmatpush.msra.mxu0 0.0
    %1184 = vmatpush.msra.mxu0 0.0
    %1185 = vmatpush.msra.mxu0 0.0
    %1186 = vmatpush.msra.mxu0 0.0
    %1187 = vmatpush.msra.mxu0 0.0
    %1188 = vmatpush.msra.mxu0 0.0
    %1189 = vmatpush.msra.mxu0 0.0
    %1190 = vmatpush.msra.mxu0 0.0
    %1191 = vmatpush.msra.mxu0 0.0
    %1192 = vmatpush.msra.mxu0 0.0
    %1193 = vmatpush.msra.mxu0 0.0
    %1194 = vmatpush.msra.mxu0 0.0
    %1195 = vmatpush.msra.mxu0 0.0
    %1196 = vmatpush.msra.mxu0 0.0
    %1197 = vmatpush.msra.mxu0 %v866
    %1198 = vmatpush.msra.mxu0 %v812
    %1199 = vmatmul.f32.gmra.mxu0 %v1178
    %v1200 = vpop.f32.mrf.mxu0
    %v1201 = vadd.f32 0.0, %v1200
    %1202 = vmatmul.f32.gmra.mxu0 %v1181
    %v1203 = vpop.f32.mrf.mxu0
    %v1204 = vadd.f32 0.0, %v1203
    %1205 = vdwg.mxu0
    %v1207 = vsel %vm1032, %v1101, 0
    %v1210 = vsel %vm1032, %v1116, 0
    %1212 = vmatpush.msra.mxu0 0.0
    %1213 = vmatpush.msra.mxu0 0.0
    %1214 = vmatpush.msra.mxu0 0.0
    %1215 = vmatpush.msra.mxu0 0.0
    %1216 = vmatpush.msra.mxu0 0.0
    %1217 = vmatpush.msra.mxu0 0.0
    %1218 = vmatpush.msra.mxu0 0.0
    %1219 = vmatpush.msra.mxu0 0.0
    %1220 = vmatpush.msra.mxu0 0.0
    %1221 = vmatpush.msra.mxu0 0.0
    %1222 = vmatpush.msra.mxu0 0.0
    %1223 = vmatpush.msra.mxu0 0.0
    %1224 = vmatpush.msra.mxu0 0.0
    %1225 = vmatpush.msra.mxu0 0.0
    %1226 = vmatpush.msra.mxu0 %v868
    %1227 = vmatpush.msra.mxu0 %v814
    %1228 = vmatmul.f32.gmra.mxu0 %v1207
    %v1229 = vpop.f32.mrf.mxu0
    %v1230 = vadd.f32 0.0, %v1229
    %1231 = vmatmul.f32.gmra.mxu0 %v1210
    %v1232 = vpop.f32.mrf.mxu0
    %v1233 = vadd.f32 0.0, %v1232
    %1234 = vdwg.mxu0
    %v1236 = vsel %vm1032, %v1131, 0
    %v1239 = vsel %vm1032, %v1146, 0
    %1241 = vmatpush.msra.mxu0 0.0
    %1242 = vmatpush.msra.mxu0 0.0
    %1243 = vmatpush.msra.mxu0 0.0
    %1244 = vmatpush.msra.mxu0 0.0
    %1245 = vmatpush.msra.mxu0 0.0
    %1246 = vmatpush.msra.mxu0 0.0
    %1247 = vmatpush.msra.mxu0 0.0
    %1248 = vmatpush.msra.mxu0 0.0
    %1249 = vmatpush.msra.mxu0 0.0
    %1250 = vmatpush.msra.mxu0 0.0
    %1251 = vmatpush.msra.mxu0 0.0
    %1252 = vmatpush.msra.mxu0 0.0
    %1253 = vmatpush.msra.mxu0 0.0
    %1254 = vmatpush.msra.mxu0 0.0
    %1255 = vmatpush.msra.mxu0 %v870
    %1256 = vmatpush.msra.mxu0 %v816
    %1257 = vmatmul.f32.gmra.mxu0 %v1236
    %v1258 = vpop.f32.mrf.mxu0
    %v1259 = vadd.f32 0.0, %v1258
    %1260 = vmatmul.f32.gmra.mxu0 %v1239
    %v1261 = vpop.f32.mrf.mxu0
    %v1262 = vadd.f32 0.0, %v1261
    %1263 = vdwg.mxu0
    %v1265 = vsel %vm1032, %v1161, 0
    %v1268 = vsel %vm1032, %v1176, 0
    %1270 = vmatpush.msra.mxu0 0.0
    %1271 = vmatpush.msra.mxu0 0.0
    %1272 = vmatpush.msra.mxu0 0.0
    %1273 = vmatpush.msra.mxu0 0.0
    %1274 = vmatpush.msra.mxu0 0.0
    %1275 = vmatpush.msra.mxu0 0.0
    %1276 = vmatpush.msra.mxu0 0.0
    %1277 = vmatpush.msra.mxu0 0.0
    %1278 = vmatpush.msra.mxu0 0.0
    %1279 = vmatpush.msra.mxu0 0.0
    %1280 = vmatpush.msra.mxu0 0.0
    %1281 = vmatpush.msra.mxu0 0.0
    %1282 = vmatpush.msra.mxu0 0.0
    %1283 = vmatpush.msra.mxu0 0.0
    %1284 = vmatpush.msra.mxu0 %v872
    %1285 = vmatpush.msra.mxu0 %v818
    %1286 = vmatmul.f32.gmra.mxu0 %v1265
    %v1287 = vpop.f32.mrf.mxu0
    %v1288 = vadd.f32 0.0, %v1287
    %1289 = vmatmul.f32.gmra.mxu0 %v1268
    %v1290 = vpop.f32.mrf.mxu0
    %v1291 = vadd.f32 0.0, %v1290
    %1292 = vdwg.mxu0
    %v1293 = vrot.slane %v1259, 4
    %v1294 = vsel %vm165, %v1293, %v1201
    %v1295 = vrot.slane %v1201, 4
    %v1296 = vsel %vm165, %v1259, %v1295
    %v1298 = vunpack.c.l.s4 1983009808
    %v1299 = vunpack.c.0.s8 %v1298
    %v1300 = vperm.slane %v1294, %v1299
    %v1302 = vunpack.c.l.s4 1983009808
    %v1303 = vunpack.c.0.s8 %v1302
    %v1304 = vperm.slane %v1296, %v1303
    %v1305 = vrot.slane %v1288, 4
    %v1306 = vsel %vm165, %v1305, %v1230
    %v1307 = vrot.slane %v1230, 4
    %v1308 = vsel %vm165, %v1288, %v1307
    %v1310 = vunpack.c.l.s4 1983009808
    %v1311 = vunpack.c.0.s8 %v1310
    %v1312 = vperm.slane %v1306, %v1311
    %v1314 = vunpack.c.l.s4 1983009808
    %v1315 = vunpack.c.0.s8 %v1314
    %v1316 = vperm.slane %v1308, %v1315
    %v1317 = vrot.slane %v1312, 4
    %v1318 = vsel %vm165, %v1317, %v1300
    %v1319 = vrot.slane %v1300, 4
    %v1320 = vsel %vm165, %v1312, %v1319
    %v1322 = vunpack.c.l.s4 1934713408
    %v1323 = vunpack.c.0.s8 %v1322
    %v1324 = vperm.slane %v1318, %v1323
    %v1326 = vunpack.c.l.s4 1934713408
    %v1327 = vunpack.c.0.s8 %v1326
    %v1328 = vperm.slane %v1320, %v1327
    %v1329 = vrot.slane %v1316, 4
    %v1330 = vsel %vm165, %v1329, %v1304
    %v1331 = vrot.slane %v1304, 4
    %v1332 = vsel %vm165, %v1316, %v1331
    %v1334 = vunpack.c.l.s4 1934713408
    %v1335 = vunpack.c.0.s8 %v1334
    %v1336 = vperm.slane %v1330, %v1335
    %v1338 = vunpack.c.l.s4 1934713408
    %v1339 = vunpack.c.0.s8 %v1338
    %v1340 = vperm.slane %v1332, %v1339
    %v1341 = vrot.slane %v1324, 4
    %v1342 = vsel %vm165, 0.0, %v1341
    %v1343 = vrot.slane %v1328, 4
    %v1344 = vsel %vm165, 0.0, %v1343
    %v1345 = vrot.slane %v1336, 4
    %v1346 = vsel %vm165, 0.0, %v1345
    %v1347 = vrot.slane %v1340, 4
    %v1348 = vsel %vm165, 0.0, %v1347
    %v1349 = vrot.slane %v1262, 4
    %v1350 = vsel %vm165, %v1349, %v1204
    %v1351 = vrot.slane %v1204, 4
    %v1352 = vsel %vm165, %v1262, %v1351
    %v1354 = vunpack.c.l.s4 1983009808
    %v1355 = vunpack.c.0.s8 %v1354
    %v1356 = vperm.slane %v1350, %v1355
    %v1358 = vunpack.c.l.s4 1983009808
    %v1359 = vunpack.c.0.s8 %v1358
    %v1360 = vperm.slane %v1352, %v1359
    %v1361 = vrot.slane %v1291, 4
    %v1362 = vsel %vm165, %v1361, %v1233
    %v1363 = vrot.slane %v1233, 4
    %v1364 = vsel %vm165, %v1291, %v1363
    %v1366 = vunpack.c.l.s4 1983009808
    %v1367 = vunpack.c.0.s8 %v1366
    %v1368 = vperm.slane %v1362, %v1367
    %v1370 = vunpack.c.l.s4 1983009808
    %v1371 = vunpack.c.0.s8 %v1370
    %v1372 = vperm.slane %v1364, %v1371
    %v1373 = vrot.slane %v1368, 4
    %v1374 = vsel %vm165, %v1373, %v1356
    %v1375 = vrot.slane %v1356, 4
    %v1376 = vsel %vm165, %v1368, %v1375
    %v1378 = vunpack.c.l.s4 1934713408
    %v1379 = vunpack.c.0.s8 %v1378
    %v1380 = vperm.slane %v1374, %v1379
    %v1382 = vunpack.c.l.s4 1934713408
    %v1383 = vunpack.c.0.s8 %v1382
    %v1384 = vperm.slane %v1376, %v1383
    %v1385 = vrot.slane %v1372, 4
    %v1386 = vsel %vm165, %v1385, %v1360
    %v1387 = vrot.slane %v1360, 4
    %v1388 = vsel %vm165, %v1372, %v1387
    %v1390 = vunpack.c.l.s4 1934713408
    %v1391 = vunpack.c.0.s8 %v1390
    %v1392 = vperm.slane %v1386, %v1391
    %v1394 = vunpack.c.l.s4 1934713408
    %v1395 = vunpack.c.0.s8 %v1394
    %v1396 = vperm.slane %v1388, %v1395
    %v1397 = vrot.slane %v1380, 4
    %v1398 = vsel %vm165, 0.0, %v1397
    %v1399 = vrot.slane %v1384, 4
    %v1400 = vsel %vm165, 0.0, %v1399
    %v1401 = vrot.slane %v1392, 4
    %v1402 = vsel %vm165, 0.0, %v1401
    %v1403 = vrot.slane %v1396, 4
    %v1404 = vsel %vm165, 0.0, %v1403
    %v1405 = vsel %vm165, %v1343, %v1324
    %v1407 = vunpack.c.l.s4 1983009808
    %v1408 = vunpack.c.0.s8 %v1407
    %v1409 = vperm.slane %v1405, %v1408
    %v1410 = vrot.slane %v1344, 4
    %v1411 = vsel %vm165, %v1410, %v1342
    %v1413 = vunpack.c.l.s4 1983009808
    %v1414 = vunpack.c.0.s8 %v1413
    %v1415 = vperm.slane %v1411, %v1414
    %v1416 = vsel %vm165, %v1347, %v1336
    %v1418 = vunpack.c.l.s4 1983009808
    %v1419 = vunpack.c.0.s8 %v1418
    %v1420 = vperm.slane %v1416, %v1419
    %v1421 = vrot.slane %v1348, 4
    %v1422 = vsel %vm165, %v1421, %v1346
    %v1424 = vunpack.c.l.s4 1983009808
    %v1425 = vunpack.c.0.s8 %v1424
    %v1426 = vperm.slane %v1422, %v1425
    %v1427 = vrot.slane %v1415, 4
    %v1428 = vsel %vm165, %v1427, %v1409
    %v1429 = vrot.slane %v1409, 4
    %v1430 = vsel %vm165, %v1415, %v1429
    %v1432 = vunpack.c.l.s4 1934713408
    %v1433 = vunpack.c.0.s8 %v1432
    %v1434 = vperm.slane %v1428, %v1433
    %v1436 = vunpack.c.l.s4 1934713408
    %v1437 = vunpack.c.0.s8 %v1436
    %v1438 = vperm.slane %v1430, %v1437
    %v1439 = vrot.slane %v1426, 4
    %v1440 = vsel %vm165, %v1439, %v1420
    %v1441 = vrot.slane %v1420, 4
    %v1442 = vsel %vm165, %v1426, %v1441
    %v1444 = vunpack.c.l.s4 1934713408
    %v1445 = vunpack.c.0.s8 %v1444
    %v1446 = vperm.slane %v1440, %v1445
    %v1448 = vunpack.c.l.s4 1934713408
    %v1449 = vunpack.c.0.s8 %v1448
    %v1450 = vperm.slane %v1442, %v1449
    %v1451 = vrot.slane %v1446, 4
    %v1452 = vsel %vm165, %v1451, %v1434
    %v1453 = vrot.slane %v1434, 4
    %v1454 = vsel %vm165, %v1446, %v1453
    %v1455 = vrot.slane %v1450, 4
    %v1456 = vsel %vm165, %v1455, %v1438
    %v1457 = vrot.slane %v1438, 4
    %v1458 = vsel %vm165, %v1450, %v1457
    %v1459 = vsel %vm165, %v1399, %v1380
    %v1461 = vunpack.c.l.s4 1983009808
    %v1462 = vunpack.c.0.s8 %v1461
    %v1463 = vperm.slane %v1459, %v1462
    %v1464 = vrot.slane %v1400, 4
    %v1465 = vsel %vm165, %v1464, %v1398
    %v1467 = vunpack.c.l.s4 1983009808
    %v1468 = vunpack.c.0.s8 %v1467
    %v1469 = vperm.slane %v1465, %v1468
    %v1470 = vsel %vm165, %v1403, %v1392
    %v1472 = vunpack.c.l.s4 1983009808
    %v1473 = vunpack.c.0.s8 %v1472
    %v1474 = vperm.slane %v1470, %v1473
    %v1475 = vrot.slane %v1404, 4
    %v1476 = vsel %vm165, %v1475, %v1402
    %v1478 = vunpack.c.l.s4 1983009808
    %v1479 = vunpack.c.0.s8 %v1478
    %v1480 = vperm.slane %v1476, %v1479
    %v1481 = vrot.slane %v1469, 4
    %v1482 = vsel %vm165, %v1481, %v1463
    %v1483 = vrot.slane %v1463, 4
    %v1484 = vsel %vm165, %v1469, %v1483
    %v1486 = vunpack.c.l.s4 1934713408
    %v1487 = vunpack.c.0.s8 %v1486
    %v1488 = vperm.slane %v1482, %v1487
    %v1490 = vunpack.c.l.s4 1934713408
    %v1491 = vunpack.c.0.s8 %v1490
    %v1492 = vperm.slane %v1484, %v1491
    %v1493 = vrot.slane %v1480, 4
    %v1494 = vsel %vm165, %v1493, %v1474
    %v1495 = vrot.slane %v1474, 4
    %v1496 = vsel %vm165, %v1480, %v1495
    %v1498 = vunpack.c.l.s4 1934713408
    %v1499 = vunpack.c.0.s8 %v1498
    %v1500 = vperm.slane %v1494, %v1499
    %v1502 = vunpack.c.l.s4 1934713408
    %v1503 = vunpack.c.0.s8 %v1502
    %v1504 = vperm.slane %v1496, %v1503
    %v1505 = vrot.slane %v1500, 4
    %v1506 = vsel %vm165, %v1505, %v1488
    %v1507 = vrot.slane %v1488, 4
    %v1508 = vsel %vm165, %v1500, %v1507
    %v1509 = vrot.slane %v1504, 4
    %v1510 = vsel %vm165, %v1509, %v1492
    %v1511 = vrot.slane %v1492, 4
    %v1512 = vsel %vm165, %v1504, %v1511
    %1515 = vrot.lane.b32.xlu0 %v1454, 8
    %v1516 = vpop.permute.xlu0 %1515
    %1517 = vrot.lane.b32.xlu0 %v1508, 8
    %v1518 = vpop.permute.xlu0 %1517
    %1523 = vrot.lane.b32.xlu0 %v1456, 16
    %v1524 = vpop.permute.xlu0 %1523
    %1525 = vrot.lane.b32.xlu0 %v1510, 16
    %v1526 = vpop.permute.xlu0 %1525
    %1531 = vrot.lane.b32.xlu0 %v1458, 24
    %v1532 = vpop.permute.xlu0 %1531
    %1533 = vrot.lane.b32.xlu0 %v1512, 24
    %v1534 = vpop.permute.xlu0 %1533
    %v1537 = vsel %vm875, %v1452, %v1516
    %v1538 = vsel %vm875, %v1506, %v1518
    %v1539 = vsel %vm1032, %v1537, %v1524
    %v1540 = vsel %vm1032, %v1538, %v1526
    %vm1541 = vcmask 195584
    %v1542 = vsel %vm1541, %v1539, %v1532
    %v1543 = vsel %vm1541, %v1540, %v1534
    %v1544 = vld [vmem:[%s5] sm:$0xff]
    %v1545 = vld [vmem:[%s5 + $0x8] sm:$0xff]
    %v1546 = vld [vmem:[%s5 + $0x10] sm:$0xff]
    %v1547 = vld [vmem:[%s5 + $0x18] sm:$0xff]
    %v1548 = vld [vmem:[%s6] sm:$0x1]
    %v1550 = vperm.slane %v1548, 0
    %v1553 = vsel %vm49, %v1542, 0
    %v1556 = vsel %vm49, %v1543, 0
    %1558 = vmatpush.msra.mxu0 0.0
    %1559 = vmatpush.msra.mxu0 0.0
    %1560 = vmatpush.msra.mxu0 0.0
    %1561 = vmatpush.msra.mxu0 0.0
    %1562 = vmatpush.msra.mxu0 0.0
    %1563 = vmatpush.msra.mxu0 0.0
    %1564 = vmatpush.msra.mxu0 0.0
    %1565 = vmatpush.msra.mxu0 0.0
    %1566 = vmatpush.msra.mxu0 0.0
    %1567 = vmatpush.msra.mxu0 0.0
    %1568 = vmatpush.msra.mxu0 0.0
    %1569 = vmatpush.msra.mxu0 0.0
    %1570 = vmatpush.msra.mxu0 %v1547
    %1571 = vmatpush.msra.mxu0 %v1546
    %1572 = vmatpush.msra.mxu0 %v1545
    %1573 = vmatpush.msra.mxu0 %v1544
    %1574 = vmatmul.f32.gmra.mxu0 %v1553
    %v1575 = vpop.f32.mrf.mxu0
    %v1576 = vadd.f32 %v1550, %v1575
    %1577 = vmatmul.f32.gmra.mxu0 %v1556
    %v1578 = vpop.f32.mrf.mxu0
    %v1579 = vadd.f32 %v1550, %v1578
    %1580 = vdwg.mxu0
    %v1581 = vadd.f32 %v45, %v1576
    %v1582 = vadd.f32 %v46, %v1579
    %v1583 = vld [vmem:[%s7] sm:$0x1]
    %v1584 = vld [vmem:[%s8] sm:$0x1]
    %v1585 = vsel %vm49, %v1581, 0.0
    %1586 = vadd.xlane.f32.xlu0 %v1585
    %v1587 = vpop.xlane.xlu0 %1586
    %v1588 = vsel %vm49, %v1582, 0.0
    %1589 = vadd.xlane.f32.xlu0 %v1588
    %v1590 = vpop.xlane.xlu0 %1589
    %v1591 = vmul.f32 %v1587, %v62
    %v1592 = vmul.f32 %v1590, %v62
    %v1593 = vsub.f32 %v1581, %v1591
    %v1594 = vsub.f32 %v1582, %v1592
    %v1595 = vmul.f32 %v1593, %v1593
    %v1596 = vmul.f32 %v1594, %v1594
    %v1597 = vsel %vm49, %v1595, 0.0
    %1598 = vadd.xlane.f32.xlu0 %v1597
    %v1599 = vpop.xlane.xlu0 %1598
    %v1600 = vsel %vm49, %v1596, 0.0
    %1601 = vadd.xlane.f32.xlu0 %v1600
    %v1602 = vpop.xlane.xlu0 %1601
    %v1603 = vmul.f32 %v1599, %v62
    %v1604 = vmul.f32 %v1602, %v62
    %v1605 = vadd.f32 %v1603, 1e-05
    %v1606 = vadd.f32 %v1604, 1e-05
    %v1607 = vrsqrt.pop %v1605
    %v1608 = vmul.f32 %v1607, %v1605
    %v1609 = vmul.f32 %v1608, %v1607
    %v1610 = vmul.f32 0.5, %v1609
    %v1611 = vsub.f32 1.5, %v1610
    %v1612 = vmul.f32 %v1607, %v1611
    %vm1613 = vweird.f32 %v1605
    %vm1614 = vweird.f32 %v1607
    %vm1615 = vmor %vm1613, %vm1614
    %v1616 = vsel %vm1615, %v1607, %v1612
    %v1617 = vrsqrt.pop %v1606
    %v1618 = vmul.f32 %v1617, %v1606
    %v1619 = vmul.f32 %v1618, %v1617
    %v1620 = vmul.f32 0.5, %v1619
    %v1621 = vsub.f32 1.5, %v1620
    %v1622 = vmul.f32 %v1617, %v1621
    %vm1623 = vweird.f32 %v1606
    %vm1624 = vweird.f32 %v1617
    %vm1625 = vmor %vm1623, %vm1624
    %v1626 = vsel %vm1625, %v1617, %v1622
    %v1627 = vmul.f32 %v1593, %v1616
    %v1628 = vmul.f32 %v1594, %v1626
    %v1630 = vperm.slane %v1583, 0
    %v1632 = vmul.f32 %v1627, %v1630
    %v1633 = vmul.f32 %v1628, %v1630
    %v1635 = vperm.slane %v1584, 0
    %v1637 = vadd.f32 %v1632, %v1635
    %v1638 = vadd.f32 %v1633, %v1635
    %v1639 = vld [vmem:[%s9] sm:$0xff]
    %v1640 = vld [vmem:[%s9 + $0x8] sm:$0xff]
    %v1641 = vld [vmem:[%s9 + $0x10] sm:$0xff]
    %v1642 = vld [vmem:[%s9 + $0x18] sm:$0xff]
    %v1643 = vld [vmem:[%s10] sm:$0x1]
    %v1645 = vperm.slane %v1643, 0
    %v1648 = vsel %vm49, %v1637, 0
    %v1651 = vsel %vm49, %v1638, 0
    %1653 = vmatpush.msra.mxu0 0.0
    %1654 = vmatpush.msra.mxu0 0.0
    %1655 = vmatpush.msra.mxu0 0.0
    %1656 = vmatpush.msra.mxu0 0.0
    %1657 = vmatpush.msra.mxu0 0.0
    %1658 = vmatpush.msra.mxu0 0.0
    %1659 = vmatpush.msra.mxu0 0.0
    %1660 = vmatpush.msra.mxu0 0.0
    %1661 = vmatpush.msra.mxu0 0.0
    %1662 = vmatpush.msra.mxu0 0.0
    %1663 = vmatpush.msra.mxu0 0.0
    %1664 = vmatpush.msra.mxu0 0.0
    %1665 = vmatpush.msra.mxu0 %v1642
    %1666 = vmatpush.msra.mxu0 %v1641
    %1667 = vmatpush.msra.mxu0 %v1640
    %1668 = vmatpush.msra.mxu0 %v1639
    %1669 = vmatmul.f32.gmra.mxu0 %v1648
    %v1670 = vpop.f32.mrf.mxu0
    %v1671 = vadd.f32 %v1645, %v1670
    %1672 = vmatmul.f32.gmra.mxu0 %v1651
    %v1673 = vpop.f32.mrf.mxu0
    %v1674 = vadd.f32 %v1645, %v1673
    %1675 = vdwg.mxu0
    %v1676 = vmax.f32 %v1671, 0.0
    %v1677 = vmax.f32 %v1674, 0.0
    %v1678 = vld [vmem:[%s11] sm:$0xff]
    %v1679 = vld [vmem:[%s11 + $0x8] sm:$0xff]
    %v1680 = vld [vmem:[%s11 + $0x10] sm:$0xff]
    %v1681 = vld [vmem:[%s11 + $0x18] sm:$0xff]
    %v1682 = vld [vmem:[%s11 + $0x20] sm:$0xff]
    %v1683 = vld [vmem:[%s11 + $0x28] sm:$0xff]
    %v1684 = vld [vmem:[%s11 + $0x30] sm:$0xff]
    %v1685 = vld [vmem:[%s11 + $0x38] sm:$0xff]
    %v1686 = vld [vmem:[%s11 + $0x40] sm:$0xff]
    %v1687 = vld [vmem:[%s11 + $0x48] sm:$0xff]
    %v1688 = vld [vmem:[%s11 + $0x50] sm:$0xff]
    %v1689 = vld [vmem:[%s11 + $0x58] sm:$0xff]
    %v1690 = vld [vmem:[%s11 + $0x60] sm:$0xff]
    %v1691 = vld [vmem:[%s11 + $0x68] sm:$0xff]
    %v1692 = vld [vmem:[%s11 + $0x70] sm:$0xff]
    %v1693 = vld [vmem:[%s11 + $0x78] sm:$0xff]
    %v1694 = vld [vmem:[%s12] sm:$0x1]
    %v1696 = vperm.slane %v1694, 0
    %1698 = vmatpush.msra.mxu0 %v1693
    %1699 = vmatpush.msra.mxu0 %v1692
    %1700 = vmatpush.msra.mxu0 %v1691
    %1701 = vmatpush.msra.mxu0 %v1690
    %1702 = vmatpush.msra.mxu0 %v1689
    %1703 = vmatpush.msra.mxu0 %v1688
    %1704 = vmatpush.msra.mxu0 %v1687
    %1705 = vmatpush.msra.mxu0 %v1686
    %1706 = vmatpush.msra.mxu0 %v1685
    %1707 = vmatpush.msra.mxu0 %v1684
    %1708 = vmatpush.msra.mxu0 %v1683
    %1709 = vmatpush.msra.mxu0 %v1682
    %1710 = vmatpush.msra.mxu0 %v1681
    %1711 = vmatpush.msra.mxu0 %v1680
    %1712 = vmatpush.msra.mxu0 %v1679
    %1713 = vmatpush.msra.mxu0 %v1678
    %1714 = vmatmul.f32.gmra.mxu0 %v1676
    %v1715 = vpop.f32.mrf.mxu0
    %v1716 = vadd.f32 %v1696, %v1715
    %1717 = vmatmul.f32.gmra.mxu0 %v1677
    %v1718 = vpop.f32.mrf.mxu0
    %v1719 = vadd.f32 %v1696, %v1718
    %1720 = vdwg.mxu0
    %v1721 = vadd.f32 %v1581, %v1716
    %v1722 = vadd.f32 %v1582, %v1719
    %1723 = vst.msk [vmem:[#allocation2] sm:$0xff] %vm49, %v1721
    %1724 = vst.msk [vmem:[#allocation2 + $0x8] sm:$0xff] %vm49, %v1722
    // Predicated region
    $region54: #{block_forward.1} parent=1 // pred_check
      _
    $region55: #{block_forward.1} parent=1 // pred_check_branch
      %1726 = sbr.rel (0) target = $region57
    $region56: #{block_forward.1} parent=1 // pred_region
      %1728 = vsyncadd [#allocation3], 0
      %s1729 = sshll.u32 [#allocation2], 4
      %s1730 = int_to_ptr.vmem [resolvable:$true] %s1729
      %s1731 = sshll.u32 %s13, 4
      %s1732 = int_to_ptr.hbm [resolvable:$true] %s1731
      %1737 = dma.vmem_to_hbm [thread:$0]  %s1730, 256, %s1732, [#allocation3], 128, 128, 8
    $region57: #{block_forward.1} parent=1 // pred_fallthru
      _
    // Predicated region
    $region58: #{block_forward.1} parent=1 // pred_check
      _
    $region59: #{block_forward.1} parent=1 // pred_check_branch
      %1739 = sbr.rel (0) target = $region61
    $region60: #{block_forward.1} parent=1 // pred_region
      %1741 = dma.done [#allocation3], 256
    $region61: #{block_forward.1} parent=1 // pred_fallthru
      _
    %1742 = vsyncpa [#allocation3], 1

</llo_original>
